<compile_context>
chip_gen: v6e
topology: v6e:2x2x1
jax: 0.10.0
libtpu: 0.0.40
codegen_flags: <defaults>
</compile_context>

<pallas_src>
import jax
import jax.numpy as jnp
from jax.experimental import pallas as pl
from jax.experimental.pallas import tpu as pltpu

IN_FEATS = 31            # model input features  (input[:, :-2])
TOTAL = IN_FEATS + 2     # 33 = full input / output width
H1, H2, OUT = 64, 16, 2
MAX_TB = 1024            # row-tile upper bound (multiple of 8); VMEM footprint stays < 3 MiB


def _filter_kernel(x_ref, w1_ref, b1_ref, w2_ref, b2_ref, w3_ref, b3_ref, o_ref):
    """Fused per-row-tile: slice feats -> 3-layer MLP -> 2-class softmax -> concat."""
    x = x_ref[...]                                   # (tb, 33)
    feats = x[:, :IN_FEATS]                          # (tb, 31) static lane slice

    h1 = jnp.dot(feats, w1_ref[...], preferred_element_type=jnp.float32) + b1_ref[...]
    h1 = jnp.maximum(h1, 0.0)                        # ReLU
    h2 = jnp.dot(h1, w2_ref[...], preferred_element_type=jnp.float32) + b2_ref[...]
    h2 = jnp.maximum(h2, 0.0)                        # ReLU
    logits = jnp.dot(h2, w3_ref[...], preferred_element_type=jnp.float32) + b3_ref[...]

    # 2-class softmax == sigmoid of the logit difference (exact, numerically robust:
    # exp overflow/underflow saturates to the correct 0/1 limits). Avoids the XLU
    # max/sum reductions of a generic softmax.
    l0 = logits[:, 0:1]
    l1 = logits[:, 1:2]
    p1 = 1.0 / (1.0 + jnp.exp(l0 - l1))              # (tb, 1)
    p0 = 1.0 - p1                                    # rows sum to exactly 1
    probs = jnp.concatenate([p0, p1], axis=-1)       # (tb, 2)

    # Emit the final (tb, 33) block directly: passthrough features + softmax tail.
    o_ref[:, :IN_FEATS] = feats.astype(o_ref.dtype)
    o_ref[:, IN_FEATS:] = probs.astype(o_ref.dtype)


def _round_up(n, m):
    return pl.cdiv(n, m) * m


def fused_filter(x, params):
    """x: (N, 33) -> (N, 33) = concat(x[:, :31], softmax(MLP(x[:, :31])))."""
    w1, b1, w2, b2, w3, b3 = params
    n = x.shape[0]

    tb = min(MAX_TB, _round_up(n, 8))                # large row tile, multiple of 8
    n_pad = _round_up(n, tb)
    if n_pad != n:
        # zero-padded rows are harmless through the MLP/softmax; sliced off below
        x = jnp.pad(x, ((0, n_pad - n), (0, 0)))
    grid = (n_pad // tb,)

    rows = lambda i: (i, 0)
    whole = lambda i: (0, 0)

    param_bytes = 4 * (IN_FEATS * H1 + H1 + H1 * H2 + H2 + H2 * OUT + OUT)
    cost = pl.CostEstimate(
        flops=2 * n_pad * (IN_FEATS * H1 + H1 * H2 + H2 * OUT),
        transcendentals=n_pad,                       # one exp per row
        bytes_accessed=2 * n_pad * TOTAL * 4 + param_bytes,
    )

    out = pl.pallas_call(
        _filter_kernel,
        out_shape=jax.ShapeDtypeStruct((n_pad, TOTAL), jnp.float32),
        grid_spec=pltpu.PrefetchScalarGridSpec(
            num_scalar_prefetch=0,
            grid=grid,
            in_specs=[
                pl.BlockSpec((tb, TOTAL), rows),      # full (N, 33) row tile
                pl.BlockSpec((IN_FEATS, H1), whole),  # W1 (VMEM-resident)
                pl.BlockSpec((1, H1), whole),         # b1
                pl.BlockSpec((H1, H2), whole),        # W2
                pl.BlockSpec((1, H2), whole),         # b2
                pl.BlockSpec((H2, OUT), whole),       # W3
                pl.BlockSpec((1, OUT), whole),        # b3
            ],
            out_specs=pl.BlockSpec((tb, TOTAL), rows),
        ),
        compiler_params=pltpu.CompilerParams(
            dimension_semantics=("parallel",),        # batch axis shards across TCs (v7x)
        ),
        cost_estimate=cost,
    )(x, w1, b1, w2, b2, w3, b3)

    return out[:n] if n_pad != n else out


def init_params(key):
    """Deterministic Linear params (PyTorch-style U(-1/sqrt(fan_in), 1/sqrt(fan_in)))."""
    ks = jax.random.split(key, 6)

    def lin(kw, kb, fan_in, fan_out):
        bound = 1.0 / jnp.sqrt(float(fan_in))
        w = jax.random.uniform(kw, (fan_in, fan_out), jnp.float32, -bound, bound)
        b = jax.random.uniform(kb, (1, fan_out), jnp.float32, -bound, bound)
        return w, b

    w1, b1 = lin(ks[0], ks[1], IN_FEATS, H1)
    w2, b2 = lin(ks[2], ks[3], H1, H2)
    w3, b3 = lin(ks[4], ks[5], H2, OUT)
    return (w1, b1, w2, b2, w3, b3)


def filter_forward(x, params):
    """Full Filter.forward: x is (N, 33). Returns (out (N,33), labels (N,), incls (N,2))."""
    labels = jnp.zeros((x.shape[0],), dtype=x.dtype)
    # labels[where(x[:,-2] > x[:,-1])] = 0 -> writes zeros into zeros: no-op, kept for fidelity.
    incls = x[:, -2:]
    out = fused_filter(x, params)                    # Pallas kernel (fused hot path)
    return out, labels, incls


def _reference(x, params):
    """Pure-JAX reference for correctness checking."""
    w1, b1, w2, b2, w3, b3 = params
    feats = x[:, :IN_FEATS]
    h1 = jnp.maximum(feats @ w1 + b1, 0.0)
    h2 = jnp.maximum(h1 @ w2 + b2, 0.0)
    logits = h2 @ w3 + b3
    probs = jax.nn.softmax(logits, axis=-1)
    return jnp.concatenate([feats, probs], axis=1)


if __name__ == "__main__":
    key = jax.random.PRNGKey(0)
    k_params, k_x = jax.random.split(key)
    params = init_params(k_params)

    N = 257   # deliberately not a tile multiple, exercises the cdiv/padding path
    x = jax.random.normal(k_x, (N, TOTAL), dtype=jnp.float32)

    out, labels, incls = filter_forward(x, params)
    jax.block_until_ready((out, labels, incls))

    # shape checks
    assert out.shape == (N, TOTAL)
    assert labels.shape == (N,)
    assert incls.shape == (N, 2)
    # softmax rows sum to 1
    assert bool(jnp.allclose(jnp.sum(out[:, -2:], axis=1), 1.0, atol=1e-5))
    # matches pure-JAX reference of the PyTorch forward
    ref = _reference(x, params)
    assert bool(jnp.allclose(out, ref, atol=1e-5, rtol=1e-5))
    assert bool(jnp.allclose(incls, x[:, -2:]))

    print("KERNEL_OK")
</pallas_src>

<mosaic_0001>
module attributes {stable_mosaic.version = 11 : i64} {
  func.func @_filter_kernel(%arg0: i32, %arg1: memref<264x33xf32, #tpu.memory_space<vmem>>, %arg2: memref<31x64xf32, #tpu.memory_space<vmem>>, %arg3: memref<1x64xf32, #tpu.memory_space<vmem>>, %arg4: memref<64x16xf32, #tpu.memory_space<vmem>>, %arg5: memref<1x16xf32, #tpu.memory_space<vmem>>, %arg6: memref<16x2xf32, #tpu.memory_space<vmem>>, %arg7: memref<1x2xf32, #tpu.memory_space<vmem>>, %arg8: memref<264x33xf32, #tpu.memory_space<vmem>>) attributes {dimension_semantics = [#tpu.dimension_semantics<parallel>], iteration_bounds = array<i64: 1>, scalar_prefetch = 0 : i64, scratch_operands = 0 : i64, tpu.core_type = #tpu.core_type<tc>, window_params = [{transform_indices = @transform_0, window_bounds = array<i64: 264, 33>}, {pipeline_mode = #tpu.pipeline_mode<synchronous>, transform_indices = @transform_1, window_bounds = array<i64: 31, 64>}, {pipeline_mode = #tpu.pipeline_mode<synchronous>, transform_indices = @transform_2, window_bounds = array<i64: 1, 64>}, {pipeline_mode = #tpu.pipeline_mode<synchronous>, transform_indices = @transform_3, window_bounds = array<i64: 64, 16>}, {pipeline_mode = #tpu.pipeline_mode<synchronous>, transform_indices = @transform_4, window_bounds = array<i64: 1, 16>}, {pipeline_mode = #tpu.pipeline_mode<synchronous>, transform_indices = @transform_5, window_bounds = array<i64: 16, 2>}, {pipeline_mode = #tpu.pipeline_mode<synchronous>, transform_indices = @transform_6, window_bounds = array<i64: 1, 2>}, {transform_indices = @transform_7, window_bounds = array<i64: 264, 33>}]} {
    %c0 = arith.constant 0 : index
    %c0_0 = arith.constant 0 : index
    %0 = vector.load %arg1[%c0, %c0_0] : memref<264x33xf32, #tpu.memory_space<vmem>>, vector<264x33xf32>
    %1 = vector.extract_strided_slice %0 {offsets = [0, 0], sizes = [264, 31], strides = [1, 1]} : vector<264x33xf32> to vector<264x31xf32>
    %c0_1 = arith.constant 0 : index
    %c0_2 = arith.constant 0 : index
    %2 = vector.load %arg2[%c0_1, %c0_2] : memref<31x64xf32, #tpu.memory_space<vmem>>, vector<31x64xf32>
    %cst = arith.constant dense<0.000000e+00> : vector<264x64xf32>
    %3 = tpu.matmul %1, %2, %cst {dimension_numbers = #tpu.dot_dimension_numbers<[1], [0], [0], [1], [0, 0, 1, 1], [], []>} : vector<264x31xf32>, vector<31x64xf32>, vector<264x64xf32> -> vector<264x64xf32>
    %c0_3 = arith.constant 0 : index
    %c0_4 = arith.constant 0 : index
    %4 = vector.load %arg3[%c0_3, %c0_4] : memref<1x64xf32, #tpu.memory_space<vmem>>, vector<1x64xf32>
    %5 = vector.broadcast %4 : vector<1x64xf32> to vector<264x64xf32>
    %6 = arith.addf %3, %5 : vector<264x64xf32>
    %cst_5 = arith.constant 0.000000e+00 : f32
    %7 = vector.broadcast %cst_5 : f32 to vector<264x64xf32>
    %8 = arith.maximumf %6, %7 : vector<264x64xf32>
    %c0_6 = arith.constant 0 : index
    %c0_7 = arith.constant 0 : index
    %9 = vector.load %arg4[%c0_6, %c0_7] : memref<64x16xf32, #tpu.memory_space<vmem>>, vector<64x16xf32>
    %cst_8 = arith.constant dense<0.000000e+00> : vector<264x16xf32>
    %10 = tpu.matmul %8, %9, %cst_8 {dimension_numbers = #tpu.dot_dimension_numbers<[1], [0], [0], [1], [0, 0, 1, 1], [], []>} : vector<264x64xf32>, vector<64x16xf32>, vector<264x16xf32> -> vector<264x16xf32>
    %c0_9 = arith.constant 0 : index
    %c0_10 = arith.constant 0 : index
    %11 = vector.load %arg5[%c0_9, %c0_10] : memref<1x16xf32, #tpu.memory_space<vmem>>, vector<1x16xf32>
    %12 = vector.broadcast %11 : vector<1x16xf32> to vector<264x16xf32>
    %13 = arith.addf %10, %12 : vector<264x16xf32>
    %cst_11 = arith.constant 0.000000e+00 : f32
    %14 = vector.broadcast %cst_11 : f32 to vector<264x16xf32>
    %15 = arith.maximumf %13, %14 : vector<264x16xf32>
    %c0_12 = arith.constant 0 : index
    %c0_13 = arith.constant 0 : index
    %16 = vector.load %arg6[%c0_12, %c0_13] : memref<16x2xf32, #tpu.memory_space<vmem>>, vector<16x2xf32>
    %cst_14 = arith.constant dense<0.000000e+00> : vector<264x2xf32>
    %17 = tpu.matmul %15, %16, %cst_14 {dimension_numbers = #tpu.dot_dimension_numbers<[1], [0], [0], [1], [0, 0, 1, 1], [], []>} : vector<264x16xf32>, vector<16x2xf32>, vector<264x2xf32> -> vector<264x2xf32>
    %c0_15 = arith.constant 0 : index
    %c0_16 = arith.constant 0 : index
    %18 = vector.load %arg7[%c0_15, %c0_16] : memref<1x2xf32, #tpu.memory_space<vmem>>, vector<1x2xf32>
    %19 = vector.broadcast %18 : vector<1x2xf32> to vector<264x2xf32>
    %20 = arith.addf %17, %19 : vector<264x2xf32>
    %21 = vector.extract_strided_slice %20 {offsets = [0, 0], sizes = [264, 1], strides = [1, 1]} : vector<264x2xf32> to vector<264x1xf32>
    %22 = vector.extract_strided_slice %20 {offsets = [0, 1], sizes = [264, 1], strides = [1, 1]} : vector<264x2xf32> to vector<264x1xf32>
    %23 = arith.subf %21, %22 : vector<264x1xf32>
    %24 = math.exp %23 : vector<264x1xf32>
    %cst_17 = arith.constant 1.000000e+00 : f32
    %25 = vector.broadcast %cst_17 : f32 to vector<264x1xf32>
    %26 = arith.addf %25, %24 : vector<264x1xf32>
    %cst_18 = arith.constant 1.000000e+00 : f32
    %27 = vector.broadcast %cst_18 : f32 to vector<264x1xf32>
    %28 = arith.divf %27, %26 : vector<264x1xf32>
    %cst_19 = arith.constant 1.000000e+00 : f32
    %29 = vector.broadcast %cst_19 : f32 to vector<264x1xf32>
    %30 = arith.subf %29, %28 : vector<264x1xf32>
    %31 = tpu.concatenate %30, %28 in 1 : vector<264x1xf32>, vector<264x1xf32> -> vector<264x2xf32>
    %c0_20 = arith.constant 0 : index
    %c0_21 = arith.constant 0 : index
    %32 = vector.load %arg8[%c0_20, %c0_21] : memref<264x33xf32, #tpu.memory_space<vmem>>, vector<264x31xf32>
    tpu.vector_store %arg8[%c0_20, %c0_21], %1 {strides = array<i32>} : memref<264x33xf32, #tpu.memory_space<vmem>>, vector<264x31xf32>,
    %c0_22 = arith.constant 0 : index
    %c31 = arith.constant 31 : index
    %33 = vector.load %arg8[%c0_22, %c31] : memref<264x33xf32, #tpu.memory_space<vmem>>, vector<264x2xf32>
    tpu.vector_store %arg8[%c0_22, %c31], %31 {strides = array<i32>} : memref<264x33xf32, #tpu.memory_space<vmem>>, vector<264x2xf32>,
    return
  }
  func.func @transform_0(%arg0: i32) -> (i32, i32) {
    %c0_i32 = arith.constant 0 : i32
    %c0_i32_0 = arith.constant 0 : i32
    return %arg0, %c0_i32 : i32, i32
  }
  func.func @transform_1(%arg0: i32) -> (i32, i32) {
    %c0_i32 = arith.constant 0 : i32
    %c0_i32_0 = arith.constant 0 : i32
    %c0_i32_1 = arith.constant 0 : i32
    return %c0_i32, %c0_i32_0 : i32, i32
  }
  func.func @transform_2(%arg0: i32) -> (i32, i32) {
    %c0_i32 = arith.constant 0 : i32
    %c0_i32_0 = arith.constant 0 : i32
    %c0_i32_1 = arith.constant 0 : i32
    return %c0_i32, %c0_i32_0 : i32, i32
  }
  func.func @transform_3(%arg0: i32) -> (i32, i32) {
    %c0_i32 = arith.constant 0 : i32
    %c0_i32_0 = arith.constant 0 : i32
    %c0_i32_1 = arith.constant 0 : i32
    return %c0_i32, %c0_i32_0 : i32, i32
  }
  func.func @transform_4(%arg0: i32) -> (i32, i32) {
    %c0_i32 = arith.constant 0 : i32
    %c0_i32_0 = arith.constant 0 : i32
    %c0_i32_1 = arith.constant 0 : i32
    return %c0_i32, %c0_i32_0 : i32, i32
  }
  func.func @transform_5(%arg0: i32) -> (i32, i32) {
    %c0_i32 = arith.constant 0 : i32
    %c0_i32_0 = arith.constant 0 : i32
    %c0_i32_1 = arith.constant 0 : i32
    return %c0_i32, %c0_i32_0 : i32, i32
  }
  func.func @transform_6(%arg0: i32) -> (i32, i32) {
    %c0_i32 = arith.constant 0 : i32
    %c0_i32_0 = arith.constant 0 : i32
    %c0_i32_1 = arith.constant 0 : i32
    return %c0_i32, %c0_i32_0 : i32, i32
  }
  func.func @transform_7(%arg0: i32) -> (i32, i32) {
    %c0_i32 = arith.constant 0 : i32
    %c0_i32_0 = arith.constant 0 : i32
    return %arg0, %c0_i32 : i32, i32
  }
}

</mosaic_0001>

<llo_original>
// kernel: tpu_custom_call.1
$region0: #{tpu_custom_call.1}
  #allocation0 [shape = 'u32[]', space=smem, size = 0x4, offset = 0x4, fixed_abs, tag = 'smem constant byte address 0x4 - core index']
  #allocation1 [shape = 'u32[144,128]{1,0:T(1,128)}', space=vmem, size = 0x12000, scoped, tag = 'internal scratch']
  %s0 = inlined_call_operand.vmem [shape: f32[264,33], index: 0, kind: input, shape index: {}]
  %s1 = inlined_call_operand.vmem [shape: f32[31,64], index: 1, kind: input, shape index: {}]
  %s2 = inlined_call_operand.vmem [shape: f32[1,64], index: 2, kind: input, shape index: {}]
  %s3 = inlined_call_operand.vmem [shape: f32[64,16], index: 3, kind: input, shape index: {}]
  %s4 = inlined_call_operand.vmem [shape: f32[1,16], index: 4, kind: input, shape index: {}]
  %s5 = inlined_call_operand.vmem [shape: f32[16,2], index: 5, kind: input, shape index: {}]
  %s6 = inlined_call_operand.vmem [shape: f32[1,2], index: 6, kind: input, shape index: {}]
  %s7 = inlined_call_operand.vmem [shape: f32[264,33], index: 7, kind: output, shape index: {}]
  %s8 = sld [smem:[#allocation0]]
  $region38: #{tpu_custom_call.1} parent=0
    _
  %s10 = ssub.s32 1, %s8
  %s11 = scalar_select 0, %s10, %s8
  // Predicated region
  $region2: #{tpu_custom_call.1} parent=0 // pred_check
    _
  $region3: #{tpu_custom_call.1} parent=0 // pred_check_branch
    %13 = sbr.rel (0) target = $region5
  $region4: #{tpu_custom_call.1} parent=0 // pred_region
    _
  $region5: #{tpu_custom_call.1} parent=0 // pred_fallthru
    _
  // Predicated region
  $region6: #{tpu_custom_call.1} parent=0 // pred_check
    _
  $region7: #{tpu_custom_call.1} parent=0 // pred_check_branch
    %15 = sbr.rel (0) target = $region9
  $region8: #{tpu_custom_call.1} parent=0 // pred_region
    _
  $region9: #{tpu_custom_call.1} parent=0 // pred_fallthru
    _
  // Predicated region
  $region10: #{tpu_custom_call.1} parent=0 // pred_check
    _
  $region11: #{tpu_custom_call.1} parent=0 // pred_check_branch
    %17 = sbr.rel (0) target = $region13
  $region12: #{tpu_custom_call.1} parent=0 // pred_region
    _
  $region13: #{tpu_custom_call.1} parent=0 // pred_fallthru
    _
  // Predicated region
  $region14: #{tpu_custom_call.1} parent=0 // pred_check
    _
  $region15: #{tpu_custom_call.1} parent=0 // pred_check_branch
    %19 = sbr.rel (0) target = $region17
  $region16: #{tpu_custom_call.1} parent=0 // pred_region
    _
  $region17: #{tpu_custom_call.1} parent=0 // pred_fallthru
    _
  // Predicated region
  $region18: #{tpu_custom_call.1} parent=0 // pred_check
    _
  $region19: #{tpu_custom_call.1} parent=0 // pred_check_branch
    %21 = sbr.rel (0) target = $region21
  $region20: #{tpu_custom_call.1} parent=0 // pred_region
    _
  $region21: #{tpu_custom_call.1} parent=0 // pred_fallthru
    _
  // Predicated region
  $region22: #{tpu_custom_call.1} parent=0 // pred_check
    _
  $region23: #{tpu_custom_call.1} parent=0 // pred_check_branch
    %23 = sbr.rel (0) target = $region25
  $region24: #{tpu_custom_call.1} parent=0 // pred_region
    _
  $region25: #{tpu_custom_call.1} parent=0 // pred_fallthru
    _
  // Predicated region
  $region26: #{tpu_custom_call.1} parent=0 // pred_check
    _
  $region27: #{tpu_custom_call.1} parent=0 // pred_check_branch
    %25 = sbr.rel (0) target = $region29
  $region28: #{tpu_custom_call.1} parent=0 // pred_region
    _
  $region29: #{tpu_custom_call.1} parent=0 // pred_fallthru
    _
  %v26 = vld [vmem:[%s0] sm:$0xff]
  %v27 = vld [vmem:[%s0 + $0x8] sm:$0xff]
  %v28 = vld [vmem:[%s0 + $0x10] sm:$0xff]
  %v29 = vld [vmem:[%s0 + $0x18] sm:$0xff]
  %v30 = vld [vmem:[%s0 + $0x20] sm:$0xff]
  %v31 = vld [vmem:[%s0 + $0x28] sm:$0xff]
  %v32 = vld [vmem:[%s0 + $0x30] sm:$0xff]
  %v33 = vld [vmem:[%s0 + $0x38] sm:$0xff]
  %v34 = vld [vmem:[%s0 + $0x40] sm:$0xff]
  %v35 = vld [vmem:[%s0 + $0x48] sm:$0xff]
  %v36 = vld [vmem:[%s0 + $0x50] sm:$0xff]
  %v37 = vld [vmem:[%s0 + $0x58] sm:$0xff]
  %v38 = vld [vmem:[%s0 + $0x60] sm:$0xff]
  %v39 = vld [vmem:[%s0 + $0x68] sm:$0xff]
  %v40 = vld [vmem:[%s0 + $0x70] sm:$0xff]
  %v41 = vld [vmem:[%s0 + $0x78] sm:$0xff]
  %v42 = vld [vmem:[%s0 + $0x80] sm:$0xff]
  %v43 = vld [vmem:[%s0 + $0x88] sm:$0xff]
  %v44 = vld [vmem:[%s0 + $0x90] sm:$0xff]
  %v45 = vld [vmem:[%s0 + $0x98] sm:$0xff]
  %v46 = vld [vmem:[%s0 + $0xa0] sm:$0xff]
  %v47 = vld [vmem:[%s0 + $0xa8] sm:$0xff]
  %v48 = vld [vmem:[%s0 + $0xb0] sm:$0xff]
  %v49 = vld [vmem:[%s0 + $0xb8] sm:$0xff]
  %v50 = vld [vmem:[%s0 + $0xc0] sm:$0xff]
  %v51 = vld [vmem:[%s0 + $0xc8] sm:$0xff]
  %v52 = vld [vmem:[%s0 + $0xd0] sm:$0xff]
  %v53 = vld [vmem:[%s0 + $0xd8] sm:$0xff]
  %v54 = vld [vmem:[%s0 + $0xe0] sm:$0xff]
  %v55 = vld [vmem:[%s0 + $0xe8] sm:$0xff]
  %v56 = vld [vmem:[%s0 + $0xf0] sm:$0xff]
  %v57 = vld [vmem:[%s0 + $0xf8] sm:$0xff]
  %v58 = vld [vmem:[%s0 + $0x100] sm:$0xff]
  %v59 = vld [vmem:[%s1] sm:$0xff]
  %v60 = vld [vmem:[%s1 + $0x8] sm:$0xff]
  %v61 = vld [vmem:[%s1 + $0x10] sm:$0xff]
  %v62 = vld [vmem:[%s1 + $0x18] sm:$0x7f]
  %v63 = vld [vmem:[%s2] sm:$0x1]
  %v65 = vlaneseq
  %v66 = vshrl.u32 %v65, 7
  %v67 = vsub.s32 0, %v66
  %v68 = vrot.slane %v63, %v67
  %vm70 = vcmask 252928
  %v72 = vsel %vm70, %v26, 0
  %v75 = vsel %vm70, %v27, 0
  %v78 = vsel %vm70, %v28, 0
  %v81 = vsel %vm70, %v29, 0
  %v84 = vsel %vm70, %v30, 0
  %v87 = vsel %vm70, %v31, 0
  %v90 = vsel %vm70, %v32, 0
  %v93 = vsel %vm70, %v33, 0
  %v96 = vsel %vm70, %v34, 0
  %v99 = vsel %vm70, %v35, 0
  %v102 = vsel %vm70, %v36, 0
  %v105 = vsel %vm70, %v37, 0
  %v108 = vsel %vm70, %v38, 0
  %v111 = vsel %vm70, %v39, 0
  %v114 = vsel %vm70, %v40, 0
  %v117 = vsel %vm70, %v41, 0
  %v120 = vsel %vm70, %v42, 0
  %v123 = vsel %vm70, %v43, 0
  %v126 = vsel %vm70, %v44, 0
  %v129 = vsel %vm70, %v45, 0
  %v132 = vsel %vm70, %v46, 0
  %v135 = vsel %vm70, %v47, 0
  %v138 = vsel %vm70, %v48, 0
  %v141 = vsel %vm70, %v49, 0
  %v144 = vsel %vm70, %v50, 0
  %v147 = vsel %vm70, %v51, 0
  %v150 = vsel %vm70, %v52, 0
  %v153 = vsel %vm70, %v53, 0
  %v156 = vsel %vm70, %v54, 0
  %v159 = vsel %vm70, %v55, 0
  %v162 = vsel %vm70, %v56, 0
  %v165 = vsel %vm70, %v57, 0
  %v168 = vsel %vm70, %v58, 0
  %vm170 = vcmask 1046528
  %v172 = vsel %vm170, %v62, 0
  %174 = vmatprep.subr.mxu0 0.0
  %175 = vmatpush1.msra.mxu0 0.0
  %176 = vmatprep.subr.mxu0 0.0
  %177 = vmatpush1.msra.mxu0 0.0
  %178 = vmatprep.subr.mxu0 0.0
  %179 = vmatpush1.msra.mxu0 0.0
  %180 = vmatprep.subr.mxu0 0.0
  %181 = vmatpush1.msra.mxu0 0.0
  %182 = vmatprep.subr.mxu0 0.0
  %183 = vmatpush1.msra.mxu0 0.0
  %184 = vmatprep.subr.mxu0 0.0
  %185 = vmatpush1.msra.mxu0 0.0
  %186 = vmatprep.subr.mxu0 0.0
  %187 = vmatpush1.msra.mxu0 0.0
  %188 = vmatprep.subr.mxu0 0.0
  %189 = vmatpush1.msra.mxu0 0.0
  %190 = vmatprep.subr.mxu0 0.0
  %191 = vmatpush1.msra.mxu0 0.0
  %192 = vmatprep.subr.mxu0 0.0
  %193 = vmatpush1.msra.mxu0 0.0
  %194 = vmatprep.subr.mxu0 0.0
  %195 = vmatpush1.msra.mxu0 0.0
  %196 = vmatprep.subr.mxu0 0.0
  %197 = vmatpush1.msra.mxu0 0.0
  %198 = vmatprep.subr.mxu0 0.0
  %199 = vmatpush1.msra.mxu0 %v172
  %200 = vmatprep.subr.mxu0 0.0
  %201 = vmatpush1.msra.mxu0 %v61
  %202 = vmatprep.subr.mxu0 0.0
  %203 = vmatpush1.msra.mxu0 %v60
  %204 = vmatprep.subr.mxu0 0.0
  %205 = vmatpush1.msra.mxu0 %v59
  %206 = vmatprep.subr.mxu0 0.0
  %207 = vmatpush2.msra.mxu0 0.0
  %208 = vmatprep.subr.mxu0 0.0
  %209 = vmatpush2.msra.mxu0 0.0
  %210 = vmatprep.subr.mxu0 0.0
  %211 = vmatpush2.msra.mxu0 0.0
  %212 = vmatprep.subr.mxu0 0.0
  %213 = vmatpush2.msra.mxu0 0.0
  %214 = vmatprep.subr.mxu0 0.0
  %215 = vmatpush2.msra.mxu0 0.0
  %216 = vmatprep.subr.mxu0 0.0
  %217 = vmatpush2.msra.mxu0 0.0
  %218 = vmatprep.subr.mxu0 0.0
  %219 = vmatpush2.msra.mxu0 0.0
  %220 = vmatprep.subr.mxu0 0.0
  %221 = vmatpush2.msra.mxu0 0.0
  %222 = vmatprep.subr.mxu0 0.0
  %223 = vmatpush2.msra.mxu0 0.0
  %224 = vmatprep.subr.mxu0 0.0
  %225 = vmatpush2.msra.mxu0 0.0
  %226 = vmatprep.subr.mxu0 0.0
  %227 = vmatpush2.msra.mxu0 0.0
  %228 = vmatprep.subr.mxu0 0.0
  %229 = vmatpush2.msra.mxu0 0.0
  %230 = vmatprep.subr.mxu0 0.0
  %231 = vmatpush2.msra.mxu0 0.0
  %232 = vmatprep.subr.mxu0 0.0
  %233 = vmatpush2.msra.mxu0 0.0
  %234 = vmatprep.subr.mxu0 0.0
  %235 = vmatpush2.msra.mxu0 0.0
  %236 = vmatprep.subr.mxu0 0.0
  %237 = vmatpush2.msra.mxu0 0.0
  %238 = vmatprep.mubr.f32.mxu0 0.0
  %239 = vmatmul.mubr.f32.gmra.mxu0 %v72
  %v240 = vpop.f32.mrf.mxu0
  %v241 = vadd.f32 %v68, %v240
  %v242 = vpop.f32.mrf.mxu0
  %243 = vmatprep.mubr.f32.mxu0 0.0
  %244 = vmatmul.mubr.f32.gmra.mxu0 %v75
  %v245 = vpop.f32.mrf.mxu0
  %v246 = vadd.f32 %v68, %v245
  %v247 = vpop.f32.mrf.mxu0
  %248 = vmatprep.mubr.f32.mxu0 0.0
  %249 = vmatmul.mubr.f32.gmra.mxu0 %v78
  %v250 = vpop.f32.mrf.mxu0
  %v251 = vadd.f32 %v68, %v250
  %v252 = vpop.f32.mrf.mxu0
  %253 = vmatprep.mubr.f32.mxu0 0.0
  %254 = vmatmul.mubr.f32.gmra.mxu0 %v81
  %v255 = vpop.f32.mrf.mxu0
  %v256 = vadd.f32 %v68, %v255
  %v257 = vpop.f32.mrf.mxu0
  %258 = vmatprep.mubr.f32.mxu0 0.0
  %259 = vmatmul.mubr.f32.gmra.mxu0 %v84
  %v260 = vpop.f32.mrf.mxu0
  %v261 = vadd.f32 %v68, %v260
  %v262 = vpop.f32.mrf.mxu0
  %263 = vmatprep.mubr.f32.mxu0 0.0
  %264 = vmatmul.mubr.f32.gmra.mxu0 %v87
  %v265 = vpop.f32.mrf.mxu0
  %v266 = vadd.f32 %v68, %v265
  %v267 = vpop.f32.mrf.mxu0
  %268 = vmatprep.mubr.f32.mxu0 0.0
  %269 = vmatmul.mubr.f32.gmra.mxu0 %v90
  %v270 = vpop.f32.mrf.mxu0
  %v271 = vadd.f32 %v68, %v270
  %v272 = vpop.f32.mrf.mxu0
  %273 = vmatprep.mubr.f32.mxu0 0.0
  %274 = vmatmul.mubr.f32.gmra.mxu0 %v93
  %v275 = vpop.f32.mrf.mxu0
  %v276 = vadd.f32 %v68, %v275
  %v277 = vpop.f32.mrf.mxu0
  %278 = vmatprep.mubr.f32.mxu0 0.0
  %279 = vmatmul.mubr.f32.gmra.mxu0 %v96
  %v280 = vpop.f32.mrf.mxu0
  %v281 = vadd.f32 %v68, %v280
  %v282 = vpop.f32.mrf.mxu0
  %283 = vmatprep.mubr.f32.mxu0 0.0
  %284 = vmatmul.mubr.f32.gmra.mxu0 %v99
  %v285 = vpop.f32.mrf.mxu0
  %v286 = vadd.f32 %v68, %v285
  %v287 = vpop.f32.mrf.mxu0
  %288 = vmatprep.mubr.f32.mxu0 0.0
  %289 = vmatmul.mubr.f32.gmra.mxu0 %v102
  %v290 = vpop.f32.mrf.mxu0
  %v291 = vadd.f32 %v68, %v290
  %v292 = vpop.f32.mrf.mxu0
  %293 = vmatprep.mubr.f32.mxu0 0.0
  %294 = vmatmul.mubr.f32.gmra.mxu0 %v105
  %v295 = vpop.f32.mrf.mxu0
  %v296 = vadd.f32 %v68, %v295
  %v297 = vpop.f32.mrf.mxu0
  %298 = vmatprep.mubr.f32.mxu0 0.0
  %299 = vmatmul.mubr.f32.gmra.mxu0 %v108
  %v300 = vpop.f32.mrf.mxu0
  %v301 = vadd.f32 %v68, %v300
  %v302 = vpop.f32.mrf.mxu0
  %303 = vmatprep.mubr.f32.mxu0 0.0
  %304 = vmatmul.mubr.f32.gmra.mxu0 %v111
  %v305 = vpop.f32.mrf.mxu0
  %v306 = vadd.f32 %v68, %v305
  %v307 = vpop.f32.mrf.mxu0
  %308 = vmatprep.mubr.f32.mxu0 0.0
  %309 = vmatmul.mubr.f32.gmra.mxu0 %v114
  %v310 = vpop.f32.mrf.mxu0
  %v311 = vadd.f32 %v68, %v310
  %v312 = vpop.f32.mrf.mxu0
  %313 = vmatprep.mubr.f32.mxu0 0.0
  %314 = vmatmul.mubr.f32.gmra.mxu0 %v117
  %v315 = vpop.f32.mrf.mxu0
  %v316 = vadd.f32 %v68, %v315
  %v317 = vpop.f32.mrf.mxu0
  %318 = vmatprep.mubr.f32.mxu0 0.0
  %319 = vmatmul.mubr.f32.gmra.mxu0 %v120
  %v320 = vpop.f32.mrf.mxu0
  %v321 = vadd.f32 %v68, %v320
  %v322 = vpop.f32.mrf.mxu0
  %323 = vmatprep.mubr.f32.mxu0 0.0
  %324 = vmatmul.mubr.f32.gmra.mxu0 %v123
  %v325 = vpop.f32.mrf.mxu0
  %v326 = vadd.f32 %v68, %v325
  %v327 = vpop.f32.mrf.mxu0
  %328 = vmatprep.mubr.f32.mxu0 0.0
  %329 = vmatmul.mubr.f32.gmra.mxu0 %v126
  %v330 = vpop.f32.mrf.mxu0
  %v331 = vadd.f32 %v68, %v330
  %v332 = vpop.f32.mrf.mxu0
  %333 = vmatprep.mubr.f32.mxu0 0.0
  %334 = vmatmul.mubr.f32.gmra.mxu0 %v129
  %v335 = vpop.f32.mrf.mxu0
  %v336 = vadd.f32 %v68, %v335
  %v337 = vpop.f32.mrf.mxu0
  %338 = vmatprep.mubr.f32.mxu0 0.0
  %339 = vmatmul.mubr.f32.gmra.mxu0 %v132
  %v340 = vpop.f32.mrf.mxu0
  %v341 = vadd.f32 %v68, %v340
  %v342 = vpop.f32.mrf.mxu0
  %343 = vmatprep.mubr.f32.mxu0 0.0
  %344 = vmatmul.mubr.f32.gmra.mxu0 %v135
  %v345 = vpop.f32.mrf.mxu0
  %v346 = vadd.f32 %v68, %v345
  %v347 = vpop.f32.mrf.mxu0
  %348 = vmatprep.mubr.f32.mxu0 0.0
  %349 = vmatmul.mubr.f32.gmra.mxu0 %v138
  %v350 = vpop.f32.mrf.mxu0
  %v351 = vadd.f32 %v68, %v350
  %v352 = vpop.f32.mrf.mxu0
  %353 = vmatprep.mubr.f32.mxu0 0.0
  %354 = vmatmul.mubr.f32.gmra.mxu0 %v141
  %v355 = vpop.f32.mrf.mxu0
  %v356 = vadd.f32 %v68, %v355
  %v357 = vpop.f32.mrf.mxu0
  %358 = vmatprep.mubr.f32.mxu0 0.0
  %359 = vmatmul.mubr.f32.gmra.mxu0 %v144
  %v360 = vpop.f32.mrf.mxu0
  %v361 = vadd.f32 %v68, %v360
  %v362 = vpop.f32.mrf.mxu0
  %363 = vmatprep.mubr.f32.mxu0 0.0
  %364 = vmatmul.mubr.f32.gmra.mxu0 %v147
  %v365 = vpop.f32.mrf.mxu0
  %v366 = vadd.f32 %v68, %v365
  %v367 = vpop.f32.mrf.mxu0
  %368 = vmatprep.mubr.f32.mxu0 0.0
  %369 = vmatmul.mubr.f32.gmra.mxu0 %v150
  %v370 = vpop.f32.mrf.mxu0
  %v371 = vadd.f32 %v68, %v370
  %v372 = vpop.f32.mrf.mxu0
  %373 = vmatprep.mubr.f32.mxu0 0.0
  %374 = vmatmul.mubr.f32.gmra.mxu0 %v153
  %v375 = vpop.f32.mrf.mxu0
  %v376 = vadd.f32 %v68, %v375
  %v377 = vpop.f32.mrf.mxu0
  %378 = vmatprep.mubr.f32.mxu0 0.0
  %379 = vmatmul.mubr.f32.gmra.mxu0 %v156
  %v380 = vpop.f32.mrf.mxu0
  %v381 = vadd.f32 %v68, %v380
  %v382 = vpop.f32.mrf.mxu0
  %383 = vmatprep.mubr.f32.mxu0 0.0
  %384 = vmatmul.mubr.f32.gmra.mxu0 %v159
  %v385 = vpop.f32.mrf.mxu0
  %v386 = vadd.f32 %v68, %v385
  %v387 = vpop.f32.mrf.mxu0
  %388 = vmatprep.mubr.f32.mxu0 0.0
  %389 = vmatmul.mubr.f32.gmra.mxu0 %v162
  %v390 = vpop.f32.mrf.mxu0
  %v391 = vadd.f32 %v68, %v390
  %v392 = vpop.f32.mrf.mxu0
  %393 = vmatprep.mubr.f32.mxu0 0.0
  %394 = vmatmul.mubr.f32.gmra.mxu0 %v165
  %v395 = vpop.f32.mrf.mxu0
  %v396 = vadd.f32 %v68, %v395
  %v397 = vpop.f32.mrf.mxu0
  %398 = vmatprep.mubr.f32.mxu0 0.0
  %399 = vmatmul.mubr.f32.gmra.mxu0 %v168
  %v400 = vpop.f32.mrf.mxu0
  %v401 = vadd.f32 %v68, %v400
  %v402 = vpop.f32.mrf.mxu0
  %403 = vdwg.mxu0
  %v404 = vmax.f32 %v241, 0.0
  %v405 = vmax.f32 %v246, 0.0
  %v406 = vmax.f32 %v251, 0.0
  %v407 = vmax.f32 %v256, 0.0
  %v408 = vmax.f32 %v261, 0.0
  %v409 = vmax.f32 %v266, 0.0
  %v410 = vmax.f32 %v271, 0.0
  %v411 = vmax.f32 %v276, 0.0
  %v412 = vmax.f32 %v281, 0.0
  %v413 = vmax.f32 %v286, 0.0
  %v414 = vmax.f32 %v291, 0.0
  %v415 = vmax.f32 %v296, 0.0
  %v416 = vmax.f32 %v301, 0.0
  %v417 = vmax.f32 %v306, 0.0
  %v418 = vmax.f32 %v311, 0.0
  %v419 = vmax.f32 %v316, 0.0
  %v420 = vmax.f32 %v321, 0.0
  %v421 = vmax.f32 %v326, 0.0
  %v422 = vmax.f32 %v331, 0.0
  %v423 = vmax.f32 %v336, 0.0
  %v424 = vmax.f32 %v341, 0.0
  %v425 = vmax.f32 %v346, 0.0
  %v426 = vmax.f32 %v351, 0.0
  %v427 = vmax.f32 %v356, 0.0
  %v428 = vmax.f32 %v361, 0.0
  %v429 = vmax.f32 %v366, 0.0
  %v430 = vmax.f32 %v371, 0.0
  %v431 = vmax.f32 %v376, 0.0
  %v432 = vmax.f32 %v381, 0.0
  %v433 = vmax.f32 %v386, 0.0
  %v434 = vmax.f32 %v391, 0.0
  %v435 = vmax.f32 %v396, 0.0
  %v436 = vmax.f32 %v401, 0.0
  %v437 = vld [vmem:[%s3] sm:$0xff]
  %v438 = vld [vmem:[%s3 + $0x8] sm:$0xff]
  %v439 = vld [vmem:[%s3 + $0x10] sm:$0xff]
  %v440 = vld [vmem:[%s3 + $0x18] sm:$0xff]
  %v441 = vld [vmem:[%s3 + $0x20] sm:$0xff]
  %v442 = vld [vmem:[%s3 + $0x28] sm:$0xff]
  %v443 = vld [vmem:[%s3 + $0x30] sm:$0xff]
  %v444 = vld [vmem:[%s3 + $0x38] sm:$0xff]
  %v445 = vld [vmem:[%s4] sm:$0x1]
  %v447 = vlaneseq
  %v448 = vshrl.u32 %v447, 7
  %v449 = vsub.s32 0, %v448
  %v450 = vrot.slane %v445, %v449
  %vm452 = vcmask 523264
  %v454 = vsel %vm452, %v404, 0
  %v457 = vsel %vm452, %v405, 0
  %v460 = vsel %vm452, %v406, 0
  %v463 = vsel %vm452, %v407, 0
  %v466 = vsel %vm452, %v408, 0
  %v469 = vsel %vm452, %v409, 0
  %v472 = vsel %vm452, %v410, 0
  %v475 = vsel %vm452, %v411, 0
  %v478 = vsel %vm452, %v412, 0
  %v481 = vsel %vm452, %v413, 0
  %v484 = vsel %vm452, %v414, 0
  %v487 = vsel %vm452, %v415, 0
  %v490 = vsel %vm452, %v416, 0
  %v493 = vsel %vm452, %v417, 0
  %v496 = vsel %vm452, %v418, 0
  %v499 = vsel %vm452, %v419, 0
  %v502 = vsel %vm452, %v420, 0
  %v505 = vsel %vm452, %v421, 0
  %v508 = vsel %vm452, %v422, 0
  %v511 = vsel %vm452, %v423, 0
  %v514 = vsel %vm452, %v424, 0
  %v517 = vsel %vm452, %v425, 0
  %v520 = vsel %vm452, %v426, 0
  %v523 = vsel %vm452, %v427, 0
  %v526 = vsel %vm452, %v428, 0
  %v529 = vsel %vm452, %v429, 0
  %v532 = vsel %vm452, %v430, 0
  %v535 = vsel %vm452, %v431, 0
  %v538 = vsel %vm452, %v432, 0
  %v541 = vsel %vm452, %v433, 0
  %v544 = vsel %vm452, %v434, 0
  %v547 = vsel %vm452, %v435, 0
  %v550 = vsel %vm452, %v436, 0
  %552 = vmatprep.subr.mxu0 0.0
  %553 = vmatpush1.msra.mxu0 0.0
  %554 = vmatprep.subr.mxu0 0.0
  %555 = vmatpush1.msra.mxu0 0.0
  %556 = vmatprep.subr.mxu0 0.0
  %557 = vmatpush1.msra.mxu0 0.0
  %558 = vmatprep.subr.mxu0 0.0
  %559 = vmatpush1.msra.mxu0 0.0
  %560 = vmatprep.subr.mxu0 0.0
  %561 = vmatpush1.msra.mxu0 0.0
  %562 = vmatprep.subr.mxu0 0.0
  %563 = vmatpush1.msra.mxu0 0.0
  %564 = vmatprep.subr.mxu0 0.0
  %565 = vmatpush1.msra.mxu0 0.0
  %566 = vmatprep.subr.mxu0 0.0
  %567 = vmatpush1.msra.mxu0 0.0
  %568 = vmatprep.subr.mxu0 0.0
  %569 = vmatpush1.msra.mxu0 %v444
  %570 = vmatprep.subr.mxu0 0.0
  %571 = vmatpush1.msra.mxu0 %v443
  %572 = vmatprep.subr.mxu0 0.0
  %573 = vmatpush1.msra.mxu0 %v442
  %574 = vmatprep.subr.mxu0 0.0
  %575 = vmatpush1.msra.mxu0 %v441
  %576 = vmatprep.subr.mxu0 0.0
  %577 = vmatpush1.msra.mxu0 %v440
  %578 = vmatprep.subr.mxu0 0.0
  %579 = vmatpush1.msra.mxu0 %v439
  %580 = vmatprep.subr.mxu0 0.0
  %581 = vmatpush1.msra.mxu0 %v438
  %582 = vmatprep.subr.mxu0 0.0
  %583 = vmatpush1.msra.mxu0 %v437
  %584 = vmatprep.subr.mxu0 0.0
  %585 = vmatpush2.msra.mxu0 0.0
  %586 = vmatprep.subr.mxu0 0.0
  %587 = vmatpush2.msra.mxu0 0.0
  %588 = vmatprep.subr.mxu0 0.0
  %589 = vmatpush2.msra.mxu0 0.0
  %590 = vmatprep.subr.mxu0 0.0
  %591 = vmatpush2.msra.mxu0 0.0
  %592 = vmatprep.subr.mxu0 0.0
  %593 = vmatpush2.msra.mxu0 0.0
  %594 = vmatprep.subr.mxu0 0.0
  %595 = vmatpush2.msra.mxu0 0.0
  %596 = vmatprep.subr.mxu0 0.0
  %597 = vmatpush2.msra.mxu0 0.0
  %598 = vmatprep.subr.mxu0 0.0
  %599 = vmatpush2.msra.mxu0 0.0
  %600 = vmatprep.subr.mxu0 0.0
  %601 = vmatpush2.msra.mxu0 0.0
  %602 = vmatprep.subr.mxu0 0.0
  %603 = vmatpush2.msra.mxu0 0.0
  %604 = vmatprep.subr.mxu0 0.0
  %605 = vmatpush2.msra.mxu0 0.0
  %606 = vmatprep.subr.mxu0 0.0
  %607 = vmatpush2.msra.mxu0 0.0
  %608 = vmatprep.subr.mxu0 0.0
  %609 = vmatpush2.msra.mxu0 0.0
  %610 = vmatprep.subr.mxu0 0.0
  %611 = vmatpush2.msra.mxu0 0.0
  %612 = vmatprep.subr.mxu0 0.0
  %613 = vmatpush2.msra.mxu0 0.0
  %614 = vmatprep.subr.mxu0 0.0
  %615 = vmatpush2.msra.mxu0 0.0
  %616 = vmatprep.mubr.f32.mxu0 0.0
  %617 = vmatmul.mubr.f32.gmra.mxu0 %v454
  %v618 = vpop.f32.mrf.mxu0
  %v619 = vadd.f32 %v450, %v618
  %v620 = vpop.f32.mrf.mxu0
  %621 = vmatprep.mubr.f32.mxu0 0.0
  %622 = vmatmul.mubr.f32.gmra.mxu0 %v457
  %v623 = vpop.f32.mrf.mxu0
  %v624 = vadd.f32 %v450, %v623
  %v625 = vpop.f32.mrf.mxu0
  %626 = vmatprep.mubr.f32.mxu0 0.0
  %627 = vmatmul.mubr.f32.gmra.mxu0 %v460
  %v628 = vpop.f32.mrf.mxu0
  %v629 = vadd.f32 %v450, %v628
  %v630 = vpop.f32.mrf.mxu0
  %631 = vmatprep.mubr.f32.mxu0 0.0
  %632 = vmatmul.mubr.f32.gmra.mxu0 %v463
  %v633 = vpop.f32.mrf.mxu0
  %v634 = vadd.f32 %v450, %v633
  %v635 = vpop.f32.mrf.mxu0
  %636 = vmatprep.mubr.f32.mxu0 0.0
  %637 = vmatmul.mubr.f32.gmra.mxu0 %v466
  %v638 = vpop.f32.mrf.mxu0
  %v639 = vadd.f32 %v450, %v638
  %v640 = vpop.f32.mrf.mxu0
  %641 = vmatprep.mubr.f32.mxu0 0.0
  %642 = vmatmul.mubr.f32.gmra.mxu0 %v469
  %v643 = vpop.f32.mrf.mxu0
  %v644 = vadd.f32 %v450, %v643
  %v645 = vpop.f32.mrf.mxu0
  %646 = vmatprep.mubr.f32.mxu0 0.0
  %647 = vmatmul.mubr.f32.gmra.mxu0 %v472
  %v648 = vpop.f32.mrf.mxu0
  %v649 = vadd.f32 %v450, %v648
  %v650 = vpop.f32.mrf.mxu0
  %651 = vmatprep.mubr.f32.mxu0 0.0
  %652 = vmatmul.mubr.f32.gmra.mxu0 %v475
  %v653 = vpop.f32.mrf.mxu0
  %v654 = vadd.f32 %v450, %v653
  %v655 = vpop.f32.mrf.mxu0
  %656 = vmatprep.mubr.f32.mxu0 0.0
  %657 = vmatmul.mubr.f32.gmra.mxu0 %v478
  %v658 = vpop.f32.mrf.mxu0
  %v659 = vadd.f32 %v450, %v658
  %v660 = vpop.f32.mrf.mxu0
  %661 = vmatprep.mubr.f32.mxu0 0.0
  %662 = vmatmul.mubr.f32.gmra.mxu0 %v481
  %v663 = vpop.f32.mrf.mxu0
  %v664 = vadd.f32 %v450, %v663
  %v665 = vpop.f32.mrf.mxu0
  %666 = vmatprep.mubr.f32.mxu0 0.0
  %667 = vmatmul.mubr.f32.gmra.mxu0 %v484
  %v668 = vpop.f32.mrf.mxu0
  %v669 = vadd.f32 %v450, %v668
  %v670 = vpop.f32.mrf.mxu0
  %671 = vmatprep.mubr.f32.mxu0 0.0
  %672 = vmatmul.mubr.f32.gmra.mxu0 %v487
  %v673 = vpop.f32.mrf.mxu0
  %v674 = vadd.f32 %v450, %v673
  %v675 = vpop.f32.mrf.mxu0
  %676 = vmatprep.mubr.f32.mxu0 0.0
  %677 = vmatmul.mubr.f32.gmra.mxu0 %v490
  %v678 = vpop.f32.mrf.mxu0
  %v679 = vadd.f32 %v450, %v678
  %v680 = vpop.f32.mrf.mxu0
  %681 = vmatprep.mubr.f32.mxu0 0.0
  %682 = vmatmul.mubr.f32.gmra.mxu0 %v493
  %v683 = vpop.f32.mrf.mxu0
  %v684 = vadd.f32 %v450, %v683
  %v685 = vpop.f32.mrf.mxu0
  %686 = vmatprep.mubr.f32.mxu0 0.0
  %687 = vmatmul.mubr.f32.gmra.mxu0 %v496
  %v688 = vpop.f32.mrf.mxu0
  %v689 = vadd.f32 %v450, %v688
  %v690 = vpop.f32.mrf.mxu0
  %691 = vmatprep.mubr.f32.mxu0 0.0
  %692 = vmatmul.mubr.f32.gmra.mxu0 %v499
  %v693 = vpop.f32.mrf.mxu0
  %v694 = vadd.f32 %v450, %v693
  %v695 = vpop.f32.mrf.mxu0
  %696 = vmatprep.mubr.f32.mxu0 0.0
  %697 = vmatmul.mubr.f32.gmra.mxu0 %v502
  %v698 = vpop.f32.mrf.mxu0
  %v699 = vadd.f32 %v450, %v698
  %v700 = vpop.f32.mrf.mxu0
  %701 = vmatprep.mubr.f32.mxu0 0.0
  %702 = vmatmul.mubr.f32.gmra.mxu0 %v505
  %v703 = vpop.f32.mrf.mxu0
  %v704 = vadd.f32 %v450, %v703
  %v705 = vpop.f32.mrf.mxu0
  %706 = vmatprep.mubr.f32.mxu0 0.0
  %707 = vmatmul.mubr.f32.gmra.mxu0 %v508
  %v708 = vpop.f32.mrf.mxu0
  %v709 = vadd.f32 %v450, %v708
  %v710 = vpop.f32.mrf.mxu0
  %711 = vmatprep.mubr.f32.mxu0 0.0
  %712 = vmatmul.mubr.f32.gmra.mxu0 %v511
  %v713 = vpop.f32.mrf.mxu0
  %v714 = vadd.f32 %v450, %v713
  %v715 = vpop.f32.mrf.mxu0
  %716 = vmatprep.mubr.f32.mxu0 0.0
  %717 = vmatmul.mubr.f32.gmra.mxu0 %v514
  %v718 = vpop.f32.mrf.mxu0
  %v719 = vadd.f32 %v450, %v718
  %v720 = vpop.f32.mrf.mxu0
  %721 = vmatprep.mubr.f32.mxu0 0.0
  %722 = vmatmul.mubr.f32.gmra.mxu0 %v517
  %v723 = vpop.f32.mrf.mxu0
  %v724 = vadd.f32 %v450, %v723
  %v725 = vpop.f32.mrf.mxu0
  %726 = vmatprep.mubr.f32.mxu0 0.0
  %727 = vmatmul.mubr.f32.gmra.mxu0 %v520
  %v728 = vpop.f32.mrf.mxu0
  %v729 = vadd.f32 %v450, %v728
  %v730 = vpop.f32.mrf.mxu0
  %731 = vmatprep.mubr.f32.mxu0 0.0
  %732 = vmatmul.mubr.f32.gmra.mxu0 %v523
  %v733 = vpop.f32.mrf.mxu0
  %v734 = vadd.f32 %v450, %v733
  %v735 = vpop.f32.mrf.mxu0
  %736 = vmatprep.mubr.f32.mxu0 0.0
  %737 = vmatmul.mubr.f32.gmra.mxu0 %v526
  %v738 = vpop.f32.mrf.mxu0
  %v739 = vadd.f32 %v450, %v738
  %v740 = vpop.f32.mrf.mxu0
  %741 = vmatprep.mubr.f32.mxu0 0.0
  %742 = vmatmul.mubr.f32.gmra.mxu0 %v529
  %v743 = vpop.f32.mrf.mxu0
  %v744 = vadd.f32 %v450, %v743
  %v745 = vpop.f32.mrf.mxu0
  %746 = vmatprep.mubr.f32.mxu0 0.0
  %747 = vmatmul.mubr.f32.gmra.mxu0 %v532
  %v748 = vpop.f32.mrf.mxu0
  %v749 = vadd.f32 %v450, %v748
  %v750 = vpop.f32.mrf.mxu0
  %751 = vmatprep.mubr.f32.mxu0 0.0
  %752 = vmatmul.mubr.f32.gmra.mxu0 %v535
  %v753 = vpop.f32.mrf.mxu0
  %v754 = vadd.f32 %v450, %v753
  %v755 = vpop.f32.mrf.mxu0
  %756 = vmatprep.mubr.f32.mxu0 0.0
  %757 = vmatmul.mubr.f32.gmra.mxu0 %v538
  %v758 = vpop.f32.mrf.mxu0
  %v759 = vadd.f32 %v450, %v758
  %v760 = vpop.f32.mrf.mxu0
  %761 = vmatprep.mubr.f32.mxu0 0.0
  %762 = vmatmul.mubr.f32.gmra.mxu0 %v541
  %v763 = vpop.f32.mrf.mxu0
  %v764 = vadd.f32 %v450, %v763
  %v765 = vpop.f32.mrf.mxu0
  %766 = vmatprep.mubr.f32.mxu0 0.0
  %767 = vmatmul.mubr.f32.gmra.mxu0 %v544
  %v768 = vpop.f32.mrf.mxu0
  %v769 = vadd.f32 %v450, %v768
  %v770 = vpop.f32.mrf.mxu0
  %771 = vmatprep.mubr.f32.mxu0 0.0
  %772 = vmatmul.mubr.f32.gmra.mxu0 %v547
  %v773 = vpop.f32.mrf.mxu0
  %v774 = vadd.f32 %v450, %v773
  %v775 = vpop.f32.mrf.mxu0
  %776 = vmatprep.mubr.f32.mxu0 0.0
  %777 = vmatmul.mubr.f32.gmra.mxu0 %v550
  %v778 = vpop.f32.mrf.mxu0
  %v779 = vadd.f32 %v450, %v778
  %v780 = vpop.f32.mrf.mxu0
  %781 = vdwg.mxu0
  %v782 = vmax.f32 %v619, 0.0
  %v783 = vmax.f32 %v624, 0.0
  %v784 = vmax.f32 %v629, 0.0
  %v785 = vmax.f32 %v634, 0.0
  %v786 = vmax.f32 %v639, 0.0
  %v787 = vmax.f32 %v644, 0.0
  %v788 = vmax.f32 %v649, 0.0
  %v789 = vmax.f32 %v654, 0.0
  %v790 = vmax.f32 %v659, 0.0
  %v791 = vmax.f32 %v664, 0.0
  %v792 = vmax.f32 %v669, 0.0
  %v793 = vmax.f32 %v674, 0.0
  %v794 = vmax.f32 %v679, 0.0
  %v795 = vmax.f32 %v684, 0.0
  %v796 = vmax.f32 %v689, 0.0
  %v797 = vmax.f32 %v694, 0.0
  %v798 = vmax.f32 %v699, 0.0
  %v799 = vmax.f32 %v704, 0.0
  %v800 = vmax.f32 %v709, 0.0
  %v801 = vmax.f32 %v714, 0.0
  %v802 = vmax.f32 %v719, 0.0
  %v803 = vmax.f32 %v724, 0.0
  %v804 = vmax.f32 %v729, 0.0
  %v805 = vmax.f32 %v734, 0.0
  %v806 = vmax.f32 %v739, 0.0
  %v807 = vmax.f32 %v744, 0.0
  %v808 = vmax.f32 %v749, 0.0
  %v809 = vmax.f32 %v754, 0.0
  %v810 = vmax.f32 %v759, 0.0
  %v811 = vmax.f32 %v764, 0.0
  %v812 = vmax.f32 %v769, 0.0
  %v813 = vmax.f32 %v774, 0.0
  %v814 = vmax.f32 %v779, 0.0
  %v815 = vld [vmem:[%s5] sm:$0xff]
  %v816 = vld [vmem:[%s5 + $0x8] sm:$0xff]
  %v817 = vld [vmem:[%s6] sm:$0x1]
  %v819 = vlaneseq
  %v820 = vshrl.u32 %v819, 7
  %v821 = vsub.s32 0, %v820
  %v822 = vrot.slane %v817, %v821
  %vm824 = vcmask 130048
  %v826 = vsel %vm824, %v782, 0
  %v829 = vsel %vm824, %v783, 0
  %v832 = vsel %vm824, %v784, 0
  %v835 = vsel %vm824, %v785, 0
  %v838 = vsel %vm824, %v786, 0
  %v841 = vsel %vm824, %v787, 0
  %v844 = vsel %vm824, %v788, 0
  %v847 = vsel %vm824, %v789, 0
  %v850 = vsel %vm824, %v790, 0
  %v853 = vsel %vm824, %v791, 0
  %v856 = vsel %vm824, %v792, 0
  %v859 = vsel %vm824, %v793, 0
  %v862 = vsel %vm824, %v794, 0
  %v865 = vsel %vm824, %v795, 0
  %v868 = vsel %vm824, %v796, 0
  %v871 = vsel %vm824, %v797, 0
  %v874 = vsel %vm824, %v798, 0
  %v877 = vsel %vm824, %v799, 0
  %v880 = vsel %vm824, %v800, 0
  %v883 = vsel %vm824, %v801, 0
  %v886 = vsel %vm824, %v802, 0
  %v889 = vsel %vm824, %v803, 0
  %v892 = vsel %vm824, %v804, 0
  %v895 = vsel %vm824, %v805, 0
  %v898 = vsel %vm824, %v806, 0
  %v901 = vsel %vm824, %v807, 0
  %v904 = vsel %vm824, %v808, 0
  %v907 = vsel %vm824, %v809, 0
  %v910 = vsel %vm824, %v810, 0
  %v913 = vsel %vm824, %v811, 0
  %v916 = vsel %vm824, %v812, 0
  %v919 = vsel %vm824, %v813, 0
  %v922 = vsel %vm824, %v814, 0
  %924 = vmatprep.subr.mxu0 0.0
  %925 = vmatpush1.msra.mxu0 0.0
  %926 = vmatprep.subr.mxu0 0.0
  %927 = vmatpush1.msra.mxu0 0.0
  %928 = vmatprep.subr.mxu0 0.0
  %929 = vmatpush1.msra.mxu0 0.0
  %930 = vmatprep.subr.mxu0 0.0
  %931 = vmatpush1.msra.mxu0 0.0
  %932 = vmatprep.subr.mxu0 0.0
  %933 = vmatpush1.msra.mxu0 0.0
  %934 = vmatprep.subr.mxu0 0.0
  %935 = vmatpush1.msra.mxu0 0.0
  %936 = vmatprep.subr.mxu0 0.0
  %937 = vmatpush1.msra.mxu0 0.0
  %938 = vmatprep.subr.mxu0 0.0
  %939 = vmatpush1.msra.mxu0 0.0
  %940 = vmatprep.subr.mxu0 0.0
  %941 = vmatpush1.msra.mxu0 0.0
  %942 = vmatprep.subr.mxu0 0.0
  %943 = vmatpush1.msra.mxu0 0.0
  %944 = vmatprep.subr.mxu0 0.0
  %945 = vmatpush1.msra.mxu0 0.0
  %946 = vmatprep.subr.mxu0 0.0
  %947 = vmatpush1.msra.mxu0 0.0
  %948 = vmatprep.subr.mxu0 0.0
  %949 = vmatpush1.msra.mxu0 0.0
  %950 = vmatprep.subr.mxu0 0.0
  %951 = vmatpush1.msra.mxu0 0.0
  %952 = vmatprep.subr.mxu0 0.0
  %953 = vmatpush1.msra.mxu0 %v816
  %954 = vmatprep.subr.mxu0 0.0
  %955 = vmatpush1.msra.mxu0 %v815
  %956 = vmatprep.subr.mxu0 0.0
  %957 = vmatpush2.msra.mxu0 0.0
  %958 = vmatprep.subr.mxu0 0.0
  %959 = vmatpush2.msra.mxu0 0.0
  %960 = vmatprep.subr.mxu0 0.0
  %961 = vmatpush2.msra.mxu0 0.0
  %962 = vmatprep.subr.mxu0 0.0
  %963 = vmatpush2.msra.mxu0 0.0
  %964 = vmatprep.subr.mxu0 0.0
  %965 = vmatpush2.msra.mxu0 0.0
  %966 = vmatprep.subr.mxu0 0.0
  %967 = vmatpush2.msra.mxu0 0.0
  %968 = vmatprep.subr.mxu0 0.0
  %969 = vmatpush2.msra.mxu0 0.0
  %970 = vmatprep.subr.mxu0 0.0
  %971 = vmatpush2.msra.mxu0 0.0
  %972 = vmatprep.subr.mxu0 0.0
  %973 = vmatpush2.msra.mxu0 0.0
  %974 = vmatprep.subr.mxu0 0.0
  %975 = vmatpush2.msra.mxu0 0.0
  %976 = vmatprep.subr.mxu0 0.0
  %977 = vmatpush2.msra.mxu0 0.0
  %978 = vmatprep.subr.mxu0 0.0
  %979 = vmatpush2.msra.mxu0 0.0
  %980 = vmatprep.subr.mxu0 0.0
  %981 = vmatpush2.msra.mxu0 0.0
  %982 = vmatprep.subr.mxu0 0.0
  %983 = vmatpush2.msra.mxu0 0.0
  %984 = vmatprep.subr.mxu0 0.0
  %985 = vmatpush2.msra.mxu0 0.0
  %986 = vmatprep.subr.mxu0 0.0
  %987 = vmatpush2.msra.mxu0 0.0
  %988 = vmatprep.mubr.f32.mxu0 0.0
  %989 = vmatmul.mubr.f32.gmra.mxu0 %v826
  %v990 = vpop.f32.mrf.mxu0
  %v991 = vadd.f32 %v822, %v990
  %v992 = vpop.f32.mrf.mxu0
  %993 = vmatprep.mubr.f32.mxu0 0.0
  %994 = vmatmul.mubr.f32.gmra.mxu0 %v829
  %v995 = vpop.f32.mrf.mxu0
  %v996 = vadd.f32 %v822, %v995
  %v997 = vpop.f32.mrf.mxu0
  %998 = vmatprep.mubr.f32.mxu0 0.0
  %999 = vmatmul.mubr.f32.gmra.mxu0 %v832
  %v1000 = vpop.f32.mrf.mxu0
  %v1001 = vadd.f32 %v822, %v1000
  %v1002 = vpop.f32.mrf.mxu0
  %1003 = vmatprep.mubr.f32.mxu0 0.0
  %1004 = vmatmul.mubr.f32.gmra.mxu0 %v835
  %v1005 = vpop.f32.mrf.mxu0
  %v1006 = vadd.f32 %v822, %v1005
  %v1007 = vpop.f32.mrf.mxu0
  %1008 = vmatprep.mubr.f32.mxu0 0.0
  %1009 = vmatmul.mubr.f32.gmra.mxu0 %v838
  %v1010 = vpop.f32.mrf.mxu0
  %v1011 = vadd.f32 %v822, %v1010
  %v1012 = vpop.f32.mrf.mxu0
  %1013 = vmatprep.mubr.f32.mxu0 0.0
  %1014 = vmatmul.mubr.f32.gmra.mxu0 %v841
  %v1015 = vpop.f32.mrf.mxu0
  %v1016 = vadd.f32 %v822, %v1015
  %v1017 = vpop.f32.mrf.mxu0
  %1018 = vmatprep.mubr.f32.mxu0 0.0
  %1019 = vmatmul.mubr.f32.gmra.mxu0 %v844
  %v1020 = vpop.f32.mrf.mxu0
  %v1021 = vadd.f32 %v822, %v1020
  %v1022 = vpop.f32.mrf.mxu0
  %1023 = vmatprep.mubr.f32.mxu0 0.0
  %1024 = vmatmul.mubr.f32.gmra.mxu0 %v847
  %v1025 = vpop.f32.mrf.mxu0
  %v1026 = vadd.f32 %v822, %v1025
  %v1027 = vpop.f32.mrf.mxu0
  %1028 = vmatprep.mubr.f32.mxu0 0.0
  %1029 = vmatmul.mubr.f32.gmra.mxu0 %v850
  %v1030 = vpop.f32.mrf.mxu0
  %v1031 = vadd.f32 %v822, %v1030
  %v1032 = vpop.f32.mrf.mxu0
  %1033 = vmatprep.mubr.f32.mxu0 0.0
  %1034 = vmatmul.mubr.f32.gmra.mxu0 %v853
  %v1035 = vpop.f32.mrf.mxu0
  %v1036 = vadd.f32 %v822, %v1035
  %v1037 = vpop.f32.mrf.mxu0
  %1038 = vmatprep.mubr.f32.mxu0 0.0
  %1039 = vmatmul.mubr.f32.gmra.mxu0 %v856
  %v1040 = vpop.f32.mrf.mxu0
  %v1041 = vadd.f32 %v822, %v1040
  %v1042 = vpop.f32.mrf.mxu0
  %1043 = vmatprep.mubr.f32.mxu0 0.0
  %1044 = vmatmul.mubr.f32.gmra.mxu0 %v859
  %v1045 = vpop.f32.mrf.mxu0
  %v1046 = vadd.f32 %v822, %v1045
  %v1047 = vpop.f32.mrf.mxu0
  %1048 = vmatprep.mubr.f32.mxu0 0.0
  %1049 = vmatmul.mubr.f32.gmra.mxu0 %v862
  %v1050 = vpop.f32.mrf.mxu0
  %v1051 = vadd.f32 %v822, %v1050
  %v1052 = vpop.f32.mrf.mxu0
  %1053 = vmatprep.mubr.f32.mxu0 0.0
  %1054 = vmatmul.mubr.f32.gmra.mxu0 %v865
  %v1055 = vpop.f32.mrf.mxu0
  %v1056 = vadd.f32 %v822, %v1055
  %v1057 = vpop.f32.mrf.mxu0
  %1058 = vmatprep.mubr.f32.mxu0 0.0
  %1059 = vmatmul.mubr.f32.gmra.mxu0 %v868
  %v1060 = vpop.f32.mrf.mxu0
  %v1061 = vadd.f32 %v822, %v1060
  %v1062 = vpop.f32.mrf.mxu0
  %1063 = vmatprep.mubr.f32.mxu0 0.0
  %1064 = vmatmul.mubr.f32.gmra.mxu0 %v871
  %v1065 = vpop.f32.mrf.mxu0
  %v1066 = vadd.f32 %v822, %v1065
  %v1067 = vpop.f32.mrf.mxu0
  %1068 = vmatprep.mubr.f32.mxu0 0.0
  %1069 = vmatmul.mubr.f32.gmra.mxu0 %v874
  %v1070 = vpop.f32.mrf.mxu0
  %v1071 = vadd.f32 %v822, %v1070
  %v1072 = vpop.f32.mrf.mxu0
  %1073 = vmatprep.mubr.f32.mxu0 0.0
  %1074 = vmatmul.mubr.f32.gmra.mxu0 %v877
  %v1075 = vpop.f32.mrf.mxu0
  %v1076 = vadd.f32 %v822, %v1075
  %v1077 = vpop.f32.mrf.mxu0
  %1078 = vmatprep.mubr.f32.mxu0 0.0
  %1079 = vmatmul.mubr.f32.gmra.mxu0 %v880
  %v1080 = vpop.f32.mrf.mxu0
  %v1081 = vadd.f32 %v822, %v1080
  %v1082 = vpop.f32.mrf.mxu0
  %1083 = vmatprep.mubr.f32.mxu0 0.0
  %1084 = vmatmul.mubr.f32.gmra.mxu0 %v883
  %v1085 = vpop.f32.mrf.mxu0
  %v1086 = vadd.f32 %v822, %v1085
  %v1087 = vpop.f32.mrf.mxu0
  %1088 = vmatprep.mubr.f32.mxu0 0.0
  %1089 = vmatmul.mubr.f32.gmra.mxu0 %v886
  %v1090 = vpop.f32.mrf.mxu0
  %v1091 = vadd.f32 %v822, %v1090
  %v1092 = vpop.f32.mrf.mxu0
  %1093 = vmatprep.mubr.f32.mxu0 0.0
  %1094 = vmatmul.mubr.f32.gmra.mxu0 %v889
  %v1095 = vpop.f32.mrf.mxu0
  %v1096 = vadd.f32 %v822, %v1095
  %v1097 = vpop.f32.mrf.mxu0
  %1098 = vmatprep.mubr.f32.mxu0 0.0
  %1099 = vmatmul.mubr.f32.gmra.mxu0 %v892
  %v1100 = vpop.f32.mrf.mxu0
  %v1101 = vadd.f32 %v822, %v1100
  %v1102 = vpop.f32.mrf.mxu0
  %1103 = vmatprep.mubr.f32.mxu0 0.0
  %1104 = vmatmul.mubr.f32.gmra.mxu0 %v895
  %v1105 = vpop.f32.mrf.mxu0
  %v1106 = vadd.f32 %v822, %v1105
  %v1107 = vpop.f32.mrf.mxu0
  %1108 = vmatprep.mubr.f32.mxu0 0.0
  %1109 = vmatmul.mubr.f32.gmra.mxu0 %v898
  %v1110 = vpop.f32.mrf.mxu0
  %v1111 = vadd.f32 %v822, %v1110
  %v1112 = vpop.f32.mrf.mxu0
  %1113 = vmatprep.mubr.f32.mxu0 0.0
  %1114 = vmatmul.mubr.f32.gmra.mxu0 %v901
  %v1115 = vpop.f32.mrf.mxu0
  %v1116 = vadd.f32 %v822, %v1115
  %v1117 = vpop.f32.mrf.mxu0
  %1118 = vmatprep.mubr.f32.mxu0 0.0
  %1119 = vmatmul.mubr.f32.gmra.mxu0 %v904
  %v1120 = vpop.f32.mrf.mxu0
  %v1121 = vadd.f32 %v822, %v1120
  %v1122 = vpop.f32.mrf.mxu0
  %1123 = vmatprep.mubr.f32.mxu0 0.0
  %1124 = vmatmul.mubr.f32.gmra.mxu0 %v907
  %v1125 = vpop.f32.mrf.mxu0
  %v1126 = vadd.f32 %v822, %v1125
  %v1127 = vpop.f32.mrf.mxu0
  %1128 = vmatprep.mubr.f32.mxu0 0.0
  %1129 = vmatmul.mubr.f32.gmra.mxu0 %v910
  %v1130 = vpop.f32.mrf.mxu0
  %v1131 = vadd.f32 %v822, %v1130
  %v1132 = vpop.f32.mrf.mxu0
  %1133 = vmatprep.mubr.f32.mxu0 0.0
  %1134 = vmatmul.mubr.f32.gmra.mxu0 %v913
  %v1135 = vpop.f32.mrf.mxu0
  %v1136 = vadd.f32 %v822, %v1135
  %v1137 = vpop.f32.mrf.mxu0
  %1138 = vmatprep.mubr.f32.mxu0 0.0
  %1139 = vmatmul.mubr.f32.gmra.mxu0 %v916
  %v1140 = vpop.f32.mrf.mxu0
  %v1141 = vadd.f32 %v822, %v1140
  %v1142 = vpop.f32.mrf.mxu0
  %1143 = vmatprep.mubr.f32.mxu0 0.0
  %1144 = vmatmul.mubr.f32.gmra.mxu0 %v919
  %v1145 = vpop.f32.mrf.mxu0
  %v1146 = vadd.f32 %v822, %v1145
  %v1147 = vpop.f32.mrf.mxu0
  %1148 = vmatprep.mubr.f32.mxu0 0.0
  %1149 = vmatmul.mubr.f32.gmra.mxu0 %v922
  %v1150 = vpop.f32.mrf.mxu0
  %v1151 = vadd.f32 %v822, %v1150
  %v1152 = vpop.f32.mrf.mxu0
  %1153 = vdwg.mxu0
  %1187 = vrot.lane.b32.xlu0 %v991, 127
  %v1188 = vpop.permute.xlu0 %1187
  %1189 = vrot.lane.b32.xlu0 %v996, 127
  %v1190 = vpop.permute.xlu0 %1189
  %1191 = vrot.lane.b32.xlu0 %v1001, 127
  %v1192 = vpop.permute.xlu0 %1191
  %1193 = vrot.lane.b32.xlu0 %v1006, 127
  %v1194 = vpop.permute.xlu0 %1193
  %1195 = vrot.lane.b32.xlu0 %v1011, 127
  %v1196 = vpop.permute.xlu0 %1195
  %1197 = vrot.lane.b32.xlu0 %v1016, 127
  %v1198 = vpop.permute.xlu0 %1197
  %1199 = vrot.lane.b32.xlu0 %v1021, 127
  %v1200 = vpop.permute.xlu0 %1199
  %1201 = vrot.lane.b32.xlu0 %v1026, 127
  %v1202 = vpop.permute.xlu0 %1201
  %1203 = vrot.lane.b32.xlu0 %v1031, 127
  %v1204 = vpop.permute.xlu0 %1203
  %1205 = vrot.lane.b32.xlu0 %v1036, 127
  %v1206 = vpop.permute.xlu0 %1205
  %1207 = vrot.lane.b32.xlu0 %v1041, 127
  %v1208 = vpop.permute.xlu0 %1207
  %1209 = vrot.lane.b32.xlu0 %v1046, 127
  %v1210 = vpop.permute.xlu0 %1209
  %1211 = vrot.lane.b32.xlu0 %v1051, 127
  %v1212 = vpop.permute.xlu0 %1211
  %1213 = vrot.lane.b32.xlu0 %v1056, 127
  %v1214 = vpop.permute.xlu0 %1213
  %1215 = vrot.lane.b32.xlu0 %v1061, 127
  %v1216 = vpop.permute.xlu0 %1215
  %1217 = vrot.lane.b32.xlu0 %v1066, 127
  %v1218 = vpop.permute.xlu0 %1217
  %1219 = vrot.lane.b32.xlu0 %v1071, 127
  %v1220 = vpop.permute.xlu0 %1219
  %1221 = vrot.lane.b32.xlu0 %v1076, 127
  %v1222 = vpop.permute.xlu0 %1221
  %1223 = vrot.lane.b32.xlu0 %v1081, 127
  %v1224 = vpop.permute.xlu0 %1223
  %1225 = vrot.lane.b32.xlu0 %v1086, 127
  %v1226 = vpop.permute.xlu0 %1225
  %1227 = vrot.lane.b32.xlu0 %v1091, 127
  %v1228 = vpop.permute.xlu0 %1227
  %1229 = vrot.lane.b32.xlu0 %v1096, 127
  %v1230 = vpop.permute.xlu0 %1229
  %1231 = vrot.lane.b32.xlu0 %v1101, 127
  %v1232 = vpop.permute.xlu0 %1231
  %1233 = vrot.lane.b32.xlu0 %v1106, 127
  %v1234 = vpop.permute.xlu0 %1233
  %1235 = vrot.lane.b32.xlu0 %v1111, 127
  %v1236 = vpop.permute.xlu0 %1235
  %1237 = vrot.lane.b32.xlu0 %v1116, 127
  %v1238 = vpop.permute.xlu0 %1237
  %1239 = vrot.lane.b32.xlu0 %v1121, 127
  %v1240 = vpop.permute.xlu0 %1239
  %1241 = vrot.lane.b32.xlu0 %v1126, 127
  %v1242 = vpop.permute.xlu0 %1241
  %1243 = vrot.lane.b32.xlu0 %v1131, 127
  %v1244 = vpop.permute.xlu0 %1243
  %1245 = vrot.lane.b32.xlu0 %v1136, 127
  %v1246 = vpop.permute.xlu0 %1245
  %1247 = vrot.lane.b32.xlu0 %v1141, 127
  %v1248 = vpop.permute.xlu0 %1247
  %1249 = vrot.lane.b32.xlu0 %v1146, 127
  %v1250 = vpop.permute.xlu0 %1249
  %1251 = vrot.lane.b32.xlu0 %v1151, 127
  %v1252 = vpop.permute.xlu0 %1251
  %v1286 = vsub.f32 %v991, %v1188
  %v1287 = vsub.f32 %v996, %v1190
  %v1288 = vsub.f32 %v1001, %v1192
  %v1289 = vsub.f32 %v1006, %v1194
  %v1290 = vsub.f32 %v1011, %v1196
  %v1291 = vsub.f32 %v1016, %v1198
  %v1292 = vsub.f32 %v1021, %v1200
  %v1293 = vsub.f32 %v1026, %v1202
  %v1294 = vsub.f32 %v1031, %v1204
  %v1295 = vsub.f32 %v1036, %v1206
  %v1296 = vsub.f32 %v1041, %v1208
  %v1297 = vsub.f32 %v1046, %v1210
  %v1298 = vsub.f32 %v1051, %v1212
  %v1299 = vsub.f32 %v1056, %v1214
  %v1300 = vsub.f32 %v1061, %v1216
  %v1301 = vsub.f32 %v1066, %v1218
  %v1302 = vsub.f32 %v1071, %v1220
  %v1303 = vsub.f32 %v1076, %v1222
  %v1304 = vsub.f32 %v1081, %v1224
  %v1305 = vsub.f32 %v1086, %v1226
  %v1306 = vsub.f32 %v1091, %v1228
  %v1307 = vsub.f32 %v1096, %v1230
  %v1308 = vsub.f32 %v1101, %v1232
  %v1309 = vsub.f32 %v1106, %v1234
  %v1310 = vsub.f32 %v1111, %v1236
  %v1311 = vsub.f32 %v1116, %v1238
  %v1312 = vsub.f32 %v1121, %v1240
  %v1313 = vsub.f32 %v1126, %v1242
  %v1314 = vsub.f32 %v1131, %v1244
  %v1315 = vsub.f32 %v1136, %v1246
  %v1316 = vsub.f32 %v1141, %v1248
  %v1317 = vsub.f32 %v1146, %v1250
  %v1318 = vsub.f32 %v1151, %v1252
  %v1319 = vmul.f32 %v1286, 1.442695
  %v1320 = vpow.pop %v1319
  %v1321 = vmul.f32 %v1287, 1.442695
  %v1322 = vpow.pop %v1321
  %v1323 = vmul.f32 %v1288, 1.442695
  %v1324 = vpow.pop %v1323
  %v1325 = vmul.f32 %v1289, 1.442695
  %v1326 = vpow.pop %v1325
  %v1327 = vmul.f32 %v1290, 1.442695
  %v1328 = vpow.pop %v1327
  %v1329 = vmul.f32 %v1291, 1.442695
  %v1330 = vpow.pop %v1329
  %v1331 = vmul.f32 %v1292, 1.442695
  %v1332 = vpow.pop %v1331
  %v1333 = vmul.f32 %v1293, 1.442695
  %v1334 = vpow.pop %v1333
  %v1335 = vmul.f32 %v1294, 1.442695
  %v1336 = vpow.pop %v1335
  %v1337 = vmul.f32 %v1295, 1.442695
  %v1338 = vpow.pop %v1337
  %v1339 = vmul.f32 %v1296, 1.442695
  %v1340 = vpow.pop %v1339
  %v1341 = vmul.f32 %v1297, 1.442695
  %v1342 = vpow.pop %v1341
  %v1343 = vmul.f32 %v1298, 1.442695
  %v1344 = vpow.pop %v1343
  %v1345 = vmul.f32 %v1299, 1.442695
  %v1346 = vpow.pop %v1345
  %v1347 = vmul.f32 %v1300, 1.442695
  %v1348 = vpow.pop %v1347
  %v1349 = vmul.f32 %v1301, 1.442695
  %v1350 = vpow.pop %v1349
  %v1351 = vmul.f32 %v1302, 1.442695
  %v1352 = vpow.pop %v1351
  %v1353 = vmul.f32 %v1303, 1.442695
  %v1354 = vpow.pop %v1353
  %v1355 = vmul.f32 %v1304, 1.442695
  %v1356 = vpow.pop %v1355
  %v1357 = vmul.f32 %v1305, 1.442695
  %v1358 = vpow.pop %v1357
  %v1359 = vmul.f32 %v1306, 1.442695
  %v1360 = vpow.pop %v1359
  %v1361 = vmul.f32 %v1307, 1.442695
  %v1362 = vpow.pop %v1361
  %v1363 = vmul.f32 %v1308, 1.442695
  %v1364 = vpow.pop %v1363
  %v1365 = vmul.f32 %v1309, 1.442695
  %v1366 = vpow.pop %v1365
  %v1367 = vmul.f32 %v1310, 1.442695
  %v1368 = vpow.pop %v1367
  %v1369 = vmul.f32 %v1311, 1.442695
  %v1370 = vpow.pop %v1369
  %v1371 = vmul.f32 %v1312, 1.442695
  %v1372 = vpow.pop %v1371
  %v1373 = vmul.f32 %v1313, 1.442695
  %v1374 = vpow.pop %v1373
  %v1375 = vmul.f32 %v1314, 1.442695
  %v1376 = vpow.pop %v1375
  %v1377 = vmul.f32 %v1315, 1.442695
  %v1378 = vpow.pop %v1377
  %v1379 = vmul.f32 %v1316, 1.442695
  %v1380 = vpow.pop %v1379
  %v1381 = vmul.f32 %v1317, 1.442695
  %v1382 = vpow.pop %v1381
  %v1383 = vmul.f32 %v1318, 1.442695
  %v1384 = vpow.pop %v1383
  %v1385 = vadd.f32 %v1320, 1.0
  %v1386 = vadd.f32 %v1322, 1.0
  %v1387 = vadd.f32 %v1324, 1.0
  %v1388 = vadd.f32 %v1326, 1.0
  %v1389 = vadd.f32 %v1328, 1.0
  %v1390 = vadd.f32 %v1330, 1.0
  %v1391 = vadd.f32 %v1332, 1.0
  %v1392 = vadd.f32 %v1334, 1.0
  %v1393 = vadd.f32 %v1336, 1.0
  %v1394 = vadd.f32 %v1338, 1.0
  %v1395 = vadd.f32 %v1340, 1.0
  %v1396 = vadd.f32 %v1342, 1.0
  %v1397 = vadd.f32 %v1344, 1.0
  %v1398 = vadd.f32 %v1346, 1.0
  %v1399 = vadd.f32 %v1348, 1.0
  %v1400 = vadd.f32 %v1350, 1.0
  %v1401 = vadd.f32 %v1352, 1.0
  %v1402 = vadd.f32 %v1354, 1.0
  %v1403 = vadd.f32 %v1356, 1.0
  %v1404 = vadd.f32 %v1358, 1.0
  %v1405 = vadd.f32 %v1360, 1.0
  %v1406 = vadd.f32 %v1362, 1.0
  %v1407 = vadd.f32 %v1364, 1.0
  %v1408 = vadd.f32 %v1366, 1.0
  %v1409 = vadd.f32 %v1368, 1.0
  %v1410 = vadd.f32 %v1370, 1.0
  %v1411 = vadd.f32 %v1372, 1.0
  %v1412 = vadd.f32 %v1374, 1.0
  %v1413 = vadd.f32 %v1376, 1.0
  %v1414 = vadd.f32 %v1378, 1.0
  %v1415 = vadd.f32 %v1380, 1.0
  %v1416 = vadd.f32 %v1382, 1.0
  %v1417 = vadd.f32 %v1384, 1.0
  %v1418 = vrcp.pop %v1385
  %v1419 = vmul.f32 1.0, %v1418
  %v1420 = vrcp.pop %v1386
  %v1421 = vmul.f32 1.0, %v1420
  %v1422 = vrcp.pop %v1387
  %v1423 = vmul.f32 1.0, %v1422
  %v1424 = vrcp.pop %v1388
  %v1425 = vmul.f32 1.0, %v1424
  %v1426 = vrcp.pop %v1389
  %v1427 = vmul.f32 1.0, %v1426
  %v1428 = vrcp.pop %v1390
  %v1429 = vmul.f32 1.0, %v1428
  %v1430 = vrcp.pop %v1391
  %v1431 = vmul.f32 1.0, %v1430
  %v1432 = vrcp.pop %v1392
  %v1433 = vmul.f32 1.0, %v1432
  %v1434 = vrcp.pop %v1393
  %v1435 = vmul.f32 1.0, %v1434
  %v1436 = vrcp.pop %v1394
  %v1437 = vmul.f32 1.0, %v1436
  %v1438 = vrcp.pop %v1395
  %v1439 = vmul.f32 1.0, %v1438
  %v1440 = vrcp.pop %v1396
  %v1441 = vmul.f32 1.0, %v1440
  %v1442 = vrcp.pop %v1397
  %v1443 = vmul.f32 1.0, %v1442
  %v1444 = vrcp.pop %v1398
  %v1445 = vmul.f32 1.0, %v1444
  %v1446 = vrcp.pop %v1399
  %v1447 = vmul.f32 1.0, %v1446
  %v1448 = vrcp.pop %v1400
  %v1449 = vmul.f32 1.0, %v1448
  %v1450 = vrcp.pop %v1401
  %v1451 = vmul.f32 1.0, %v1450
  %v1452 = vrcp.pop %v1402
  %v1453 = vmul.f32 1.0, %v1452
  %v1454 = vrcp.pop %v1403
  %v1455 = vmul.f32 1.0, %v1454
  %v1456 = vrcp.pop %v1404
  %v1457 = vmul.f32 1.0, %v1456
  %v1458 = vrcp.pop %v1405
  %v1459 = vmul.f32 1.0, %v1458
  %v1460 = vrcp.pop %v1406
  %v1461 = vmul.f32 1.0, %v1460
  %v1462 = vrcp.pop %v1407
  %v1463 = vmul.f32 1.0, %v1462
  %v1464 = vrcp.pop %v1408
  %v1465 = vmul.f32 1.0, %v1464
  %v1466 = vrcp.pop %v1409
  %v1467 = vmul.f32 1.0, %v1466
  %v1468 = vrcp.pop %v1410
  %v1469 = vmul.f32 1.0, %v1468
  %v1470 = vrcp.pop %v1411
  %v1471 = vmul.f32 1.0, %v1470
  %v1472 = vrcp.pop %v1412
  %v1473 = vmul.f32 1.0, %v1472
  %v1474 = vrcp.pop %v1413
  %v1475 = vmul.f32 1.0, %v1474
  %v1476 = vrcp.pop %v1414
  %v1477 = vmul.f32 1.0, %v1476
  %v1478 = vrcp.pop %v1415
  %v1479 = vmul.f32 1.0, %v1478
  %v1480 = vrcp.pop %v1416
  %v1481 = vmul.f32 1.0, %v1480
  %v1482 = vrcp.pop %v1417
  %v1483 = vmul.f32 1.0, %v1482
  %v1484 = vsub.f32 1.0, %v1419
  %v1485 = vsub.f32 1.0, %v1421
  %v1486 = vsub.f32 1.0, %v1423
  %v1487 = vsub.f32 1.0, %v1425
  %v1488 = vsub.f32 1.0, %v1427
  %v1489 = vsub.f32 1.0, %v1429
  %v1490 = vsub.f32 1.0, %v1431
  %v1491 = vsub.f32 1.0, %v1433
  %v1492 = vsub.f32 1.0, %v1435
  %v1493 = vsub.f32 1.0, %v1437
  %v1494 = vsub.f32 1.0, %v1439
  %v1495 = vsub.f32 1.0, %v1441
  %v1496 = vsub.f32 1.0, %v1443
  %v1497 = vsub.f32 1.0, %v1445
  %v1498 = vsub.f32 1.0, %v1447
  %v1499 = vsub.f32 1.0, %v1449
  %v1500 = vsub.f32 1.0, %v1451
  %v1501 = vsub.f32 1.0, %v1453
  %v1502 = vsub.f32 1.0, %v1455
  %v1503 = vsub.f32 1.0, %v1457
  %v1504 = vsub.f32 1.0, %v1459
  %v1505 = vsub.f32 1.0, %v1461
  %v1506 = vsub.f32 1.0, %v1463
  %v1507 = vsub.f32 1.0, %v1465
  %v1508 = vsub.f32 1.0, %v1467
  %v1509 = vsub.f32 1.0, %v1469
  %v1510 = vsub.f32 1.0, %v1471
  %v1511 = vsub.f32 1.0, %v1473
  %v1512 = vsub.f32 1.0, %v1475
  %v1513 = vsub.f32 1.0, %v1477
  %v1514 = vsub.f32 1.0, %v1479
  %v1515 = vsub.f32 1.0, %v1481
  %v1516 = vsub.f32 1.0, %v1483
  %1550 = vrot.lane.b32.xlu0 %v1419, 1
  %v1551 = vpop.permute.xlu0 %1550
  %1552 = vrot.lane.b32.xlu0 %v1421, 1
  %v1553 = vpop.permute.xlu0 %1552
  %1554 = vrot.lane.b32.xlu0 %v1423, 1
  %v1555 = vpop.permute.xlu0 %1554
  %1556 = vrot.lane.b32.xlu0 %v1425, 1
  %v1557 = vpop.permute.xlu0 %1556
  %1558 = vrot.lane.b32.xlu0 %v1427, 1
  %v1559 = vpop.permute.xlu0 %1558
  %1560 = vrot.lane.b32.xlu0 %v1429, 1
  %v1561 = vpop.permute.xlu0 %1560
  %1562 = vrot.lane.b32.xlu0 %v1431, 1
  %v1563 = vpop.permute.xlu0 %1562
  %1564 = vrot.lane.b32.xlu0 %v1433, 1
  %v1565 = vpop.permute.xlu0 %1564
  %1566 = vrot.lane.b32.xlu0 %v1435, 1
  %v1567 = vpop.permute.xlu0 %1566
  %1568 = vrot.lane.b32.xlu0 %v1437, 1
  %v1569 = vpop.permute.xlu0 %1568
  %1570 = vrot.lane.b32.xlu0 %v1439, 1
  %v1571 = vpop.permute.xlu0 %1570
  %1572 = vrot.lane.b32.xlu0 %v1441, 1
  %v1573 = vpop.permute.xlu0 %1572
  %1574 = vrot.lane.b32.xlu0 %v1443, 1
  %v1575 = vpop.permute.xlu0 %1574
  %1576 = vrot.lane.b32.xlu0 %v1445, 1
  %v1577 = vpop.permute.xlu0 %1576
  %1578 = vrot.lane.b32.xlu0 %v1447, 1
  %v1579 = vpop.permute.xlu0 %1578
  %1580 = vrot.lane.b32.xlu0 %v1449, 1
  %v1581 = vpop.permute.xlu0 %1580
  %1582 = vrot.lane.b32.xlu0 %v1451, 1
  %v1583 = vpop.permute.xlu0 %1582
  %1584 = vrot.lane.b32.xlu0 %v1453, 1
  %v1585 = vpop.permute.xlu0 %1584
  %1586 = vrot.lane.b32.xlu0 %v1455, 1
  %v1587 = vpop.permute.xlu0 %1586
  %1588 = vrot.lane.b32.xlu0 %v1457, 1
  %v1589 = vpop.permute.xlu0 %1588
  %1590 = vrot.lane.b32.xlu0 %v1459, 1
  %v1591 = vpop.permute.xlu0 %1590
  %1592 = vrot.lane.b32.xlu0 %v1461, 1
  %v1593 = vpop.permute.xlu0 %1592
  %1594 = vrot.lane.b32.xlu0 %v1463, 1
  %v1595 = vpop.permute.xlu0 %1594
  %1596 = vrot.lane.b32.xlu0 %v1465, 1
  %v1597 = vpop.permute.xlu0 %1596
  %1598 = vrot.lane.b32.xlu0 %v1467, 1
  %v1599 = vpop.permute.xlu0 %1598
  %1600 = vrot.lane.b32.xlu0 %v1469, 1
  %v1601 = vpop.permute.xlu0 %1600
  %1602 = vrot.lane.b32.xlu0 %v1471, 1
  %v1603 = vpop.permute.xlu0 %1602
  %1604 = vrot.lane.b32.xlu0 %v1473, 1
  %v1605 = vpop.permute.xlu0 %1604
  %1606 = vrot.lane.b32.xlu0 %v1475, 1
  %v1607 = vpop.permute.xlu0 %1606
  %1608 = vrot.lane.b32.xlu0 %v1477, 1
  %v1609 = vpop.permute.xlu0 %1608
  %1610 = vrot.lane.b32.xlu0 %v1479, 1
  %v1611 = vpop.permute.xlu0 %1610
  %1612 = vrot.lane.b32.xlu0 %v1481, 1
  %v1613 = vpop.permute.xlu0 %1612
  %1614 = vrot.lane.b32.xlu0 %v1483, 1
  %v1615 = vpop.permute.xlu0 %1614
  %vm1649 = vcmask 7168
  %v1650 = vsel %vm1649, %v1484, %v1551
  %v1651 = vsel %vm1649, %v1485, %v1553
  %v1652 = vsel %vm1649, %v1486, %v1555
  %v1653 = vsel %vm1649, %v1487, %v1557
  %v1654 = vsel %vm1649, %v1488, %v1559
  %v1655 = vsel %vm1649, %v1489, %v1561
  %v1656 = vsel %vm1649, %v1490, %v1563
  %v1657 = vsel %vm1649, %v1491, %v1565
  %v1658 = vsel %vm1649, %v1492, %v1567
  %v1659 = vsel %vm1649, %v1493, %v1569
  %v1660 = vsel %vm1649, %v1494, %v1571
  %v1661 = vsel %vm1649, %v1495, %v1573
  %v1662 = vsel %vm1649, %v1496, %v1575
  %v1663 = vsel %vm1649, %v1497, %v1577
  %v1664 = vsel %vm1649, %v1498, %v1579
  %v1665 = vsel %vm1649, %v1499, %v1581
  %v1666 = vsel %vm1649, %v1500, %v1583
  %v1667 = vsel %vm1649, %v1501, %v1585
  %v1668 = vsel %vm1649, %v1502, %v1587
  %v1669 = vsel %vm1649, %v1503, %v1589
  %v1670 = vsel %vm1649, %v1504, %v1591
  %v1671 = vsel %vm1649, %v1505, %v1593
  %v1672 = vsel %vm1649, %v1506, %v1595
  %v1673 = vsel %vm1649, %v1507, %v1597
  %v1674 = vsel %vm1649, %v1508, %v1599
  %v1675 = vsel %vm1649, %v1509, %v1601
  %v1676 = vsel %vm1649, %v1510, %v1603
  %v1677 = vsel %vm1649, %v1511, %v1605
  %v1678 = vsel %vm1649, %v1512, %v1607
  %v1679 = vsel %vm1649, %v1513, %v1609
  %v1680 = vsel %vm1649, %v1514, %v1611
  %v1681 = vsel %vm1649, %v1515, %v1613
  %v1682 = vsel %vm1649, %v1516, %v1615
  %1683 = vst.msk [vmem:[%s7] sm:$0xff] %vm70, %v26
  %1684 = vst.msk [vmem:[%s7 + $0x8] sm:$0xff] %vm70, %v27
  %1685 = vst.msk [vmem:[%s7 + $0x10] sm:$0xff] %vm70, %v28
  %1686 = vst.msk [vmem:[%s7 + $0x18] sm:$0xff] %vm70, %v29
  %1687 = vst.msk [vmem:[%s7 + $0x20] sm:$0xff] %vm70, %v30
  %1688 = vst.msk [vmem:[%s7 + $0x28] sm:$0xff] %vm70, %v31
  %1689 = vst.msk [vmem:[%s7 + $0x30] sm:$0xff] %vm70, %v32
  %1690 = vst.msk [vmem:[%s7 + $0x38] sm:$0xff] %vm70, %v33
  %1691 = vst.msk [vmem:[%s7 + $0x40] sm:$0xff] %vm70, %v34
  %1692 = vst.msk [vmem:[%s7 + $0x48] sm:$0xff] %vm70, %v35
  %1693 = vst.msk [vmem:[%s7 + $0x50] sm:$0xff] %vm70, %v36
  %1694 = vst.msk [vmem:[%s7 + $0x58] sm:$0xff] %vm70, %v37
  %1695 = vst.msk [vmem:[%s7 + $0x60] sm:$0xff] %vm70, %v38
  %1696 = vst.msk [vmem:[%s7 + $0x68] sm:$0xff] %vm70, %v39
  %1697 = vst.msk [vmem:[%s7 + $0x70] sm:$0xff] %vm70, %v40
  %1698 = vst.msk [vmem:[%s7 + $0x78] sm:$0xff] %vm70, %v41
  %1699 = vst.msk [vmem:[%s7 + $0x80] sm:$0xff] %vm70, %v42
  %1700 = vst.msk [vmem:[%s7 + $0x88] sm:$0xff] %vm70, %v43
  %1701 = vst.msk [vmem:[%s7 + $0x90] sm:$0xff] %vm70, %v44
  %1702 = vst.msk [vmem:[%s7 + $0x98] sm:$0xff] %vm70, %v45
  %1703 = vst.msk [vmem:[%s7 + $0xa0] sm:$0xff] %vm70, %v46
  %1704 = vst.msk [vmem:[%s7 + $0xa8] sm:$0xff] %vm70, %v47
  %1705 = vst.msk [vmem:[%s7 + $0xb0] sm:$0xff] %vm70, %v48
  %1706 = vst.msk [vmem:[%s7 + $0xb8] sm:$0xff] %vm70, %v49
  %1707 = vst.msk [vmem:[%s7 + $0xc0] sm:$0xff] %vm70, %v50
  %1708 = vst.msk [vmem:[%s7 + $0xc8] sm:$0xff] %vm70, %v51
  %1709 = vst.msk [vmem:[%s7 + $0xd0] sm:$0xff] %vm70, %v52
  %1710 = vst.msk [vmem:[%s7 + $0xd8] sm:$0xff] %vm70, %v53
  %1711 = vst.msk [vmem:[%s7 + $0xe0] sm:$0xff] %vm70, %v54
  %1712 = vst.msk [vmem:[%s7 + $0xe8] sm:$0xff] %vm70, %v55
  %1713 = vst.msk [vmem:[%s7 + $0xf0] sm:$0xff] %vm70, %v56
  %1714 = vst.msk [vmem:[%s7 + $0xf8] sm:$0xff] %vm70, %v57
  %1715 = vst.msk [vmem:[%s7 + $0x100] sm:$0xff] %vm70, %v58
  %1749 = vrot.lane.b32.xlu0 %v1650, 31
  %v1750 = vpop.permute.xlu0 %1749
  %1751 = vrot.lane.b32.xlu0 %v1651, 31
  %v1752 = vpop.permute.xlu0 %1751
  %1753 = vrot.lane.b32.xlu0 %v1652, 31
  %v1754 = vpop.permute.xlu0 %1753
  %1755 = vrot.lane.b32.xlu0 %v1653, 31
  %v1756 = vpop.permute.xlu0 %1755
  %1757 = vrot.lane.b32.xlu0 %v1654, 31
  %v1758 = vpop.permute.xlu0 %1757
  %1759 = vrot.lane.b32.xlu0 %v1655, 31
  %v1760 = vpop.permute.xlu0 %1759
  %1761 = vrot.lane.b32.xlu0 %v1656, 31
  %v1762 = vpop.permute.xlu0 %1761
  %1763 = vrot.lane.b32.xlu0 %v1657, 31
  %v1764 = vpop.permute.xlu0 %1763
  %1765 = vrot.lane.b32.xlu0 %v1658, 31
  %v1766 = vpop.permute.xlu0 %1765
  %1767 = vrot.lane.b32.xlu0 %v1659, 31
  %v1768 = vpop.permute.xlu0 %1767
  %1769 = vrot.lane.b32.xlu0 %v1660, 31
  %v1770 = vpop.permute.xlu0 %1769
  %1771 = vrot.lane.b32.xlu0 %v1661, 31
  %v1772 = vpop.permute.xlu0 %1771
  %1773 = vrot.lane.b32.xlu0 %v1662, 31
  %v1774 = vpop.permute.xlu0 %1773
  %1775 = vrot.lane.b32.xlu0 %v1663, 31
  %v1776 = vpop.permute.xlu0 %1775
  %1777 = vrot.lane.b32.xlu0 %v1664, 31
  %v1778 = vpop.permute.xlu0 %1777
  %1779 = vrot.lane.b32.xlu0 %v1665, 31
  %v1780 = vpop.permute.xlu0 %1779
  %1781 = vrot.lane.b32.xlu0 %v1666, 31
  %v1782 = vpop.permute.xlu0 %1781
  %1783 = vrot.lane.b32.xlu0 %v1667, 31
  %v1784 = vpop.permute.xlu0 %1783
  %1785 = vrot.lane.b32.xlu0 %v1668, 31
  %v1786 = vpop.permute.xlu0 %1785
  %1787 = vrot.lane.b32.xlu0 %v1669, 31
  %v1788 = vpop.permute.xlu0 %1787
  %1789 = vrot.lane.b32.xlu0 %v1670, 31
  %v1790 = vpop.permute.xlu0 %1789
  %1791 = vrot.lane.b32.xlu0 %v1671, 31
  %v1792 = vpop.permute.xlu0 %1791
  %1793 = vrot.lane.b32.xlu0 %v1672, 31
  %v1794 = vpop.permute.xlu0 %1793
  %1795 = vrot.lane.b32.xlu0 %v1673, 31
  %v1796 = vpop.permute.xlu0 %1795
  %1797 = vrot.lane.b32.xlu0 %v1674, 31
  %v1798 = vpop.permute.xlu0 %1797
  %1799 = vrot.lane.b32.xlu0 %v1675, 31
  %v1800 = vpop.permute.xlu0 %1799
  %1801 = vrot.lane.b32.xlu0 %v1676, 31
  %v1802 = vpop.permute.xlu0 %1801
  %1803 = vrot.lane.b32.xlu0 %v1677, 31
  %v1804 = vpop.permute.xlu0 %1803
  %1805 = vrot.lane.b32.xlu0 %v1678, 31
  %v1806 = vpop.permute.xlu0 %1805
  %1807 = vrot.lane.b32.xlu0 %v1679, 31
  %v1808 = vpop.permute.xlu0 %1807
  %1809 = vrot.lane.b32.xlu0 %v1680, 31
  %v1810 = vpop.permute.xlu0 %1809
  %1811 = vrot.lane.b32.xlu0 %v1681, 31
  %v1812 = vpop.permute.xlu0 %1811
  %1813 = vrot.lane.b32.xlu0 %v1682, 31
  %v1814 = vpop.permute.xlu0 %1813
  %vm1848 = vcmask 269560
  %1849 = vst.msk [vmem:[%s7] sm:$0xff] %vm1848, %v1750
  %1850 = vst.msk [vmem:[%s7 + $0x8] sm:$0xff] %vm1848, %v1752
  %1851 = vst.msk [vmem:[%s7 + $0x10] sm:$0xff] %vm1848, %v1754
  %1852 = vst.msk [vmem:[%s7 + $0x18] sm:$0xff] %vm1848, %v1756
  %1853 = vst.msk [vmem:[%s7 + $0x20] sm:$0xff] %vm1848, %v1758
  %1854 = vst.msk [vmem:[%s7 + $0x28] sm:$0xff] %vm1848, %v1760
  %1855 = vst.msk [vmem:[%s7 + $0x30] sm:$0xff] %vm1848, %v1762
  %1856 = vst.msk [vmem:[%s7 + $0x38] sm:$0xff] %vm1848, %v1764
  %1857 = vst.msk [vmem:[%s7 + $0x40] sm:$0xff] %vm1848, %v1766
  %1858 = vst.msk [vmem:[%s7 + $0x48] sm:$0xff] %vm1848, %v1768
  %1859 = vst.msk [vmem:[%s7 + $0x50] sm:$0xff] %vm1848, %v1770
  %1860 = vst.msk [vmem:[%s7 + $0x58] sm:$0xff] %vm1848, %v1772
  %1861 = vst.msk [vmem:[%s7 + $0x60] sm:$0xff] %vm1848, %v1774
  %1862 = vst.msk [vmem:[%s7 + $0x68] sm:$0xff] %vm1848, %v1776
  %1863 = vst.msk [vmem:[%s7 + $0x70] sm:$0xff] %vm1848, %v1778
  %1864 = vst.msk [vmem:[%s7 + $0x78] sm:$0xff] %vm1848, %v1780
  %1865 = vst.msk [vmem:[%s7 + $0x80] sm:$0xff] %vm1848, %v1782
  %1866 = vst.msk [vmem:[%s7 + $0x88] sm:$0xff] %vm1848, %v1784
  %1867 = vst.msk [vmem:[%s7 + $0x90] sm:$0xff] %vm1848, %v1786
  %1868 = vst.msk [vmem:[%s7 + $0x98] sm:$0xff] %vm1848, %v1788
  %1869 = vst.msk [vmem:[%s7 + $0xa0] sm:$0xff] %vm1848, %v1790
  %1870 = vst.msk [vmem:[%s7 + $0xa8] sm:$0xff] %vm1848, %v1792
  %1871 = vst.msk [vmem:[%s7 + $0xb0] sm:$0xff] %vm1848, %v1794
  %1872 = vst.msk [vmem:[%s7 + $0xb8] sm:$0xff] %vm1848, %v1796
  %1873 = vst.msk [vmem:[%s7 + $0xc0] sm:$0xff] %vm1848, %v1798
  %1874 = vst.msk [vmem:[%s7 + $0xc8] sm:$0xff] %vm1848, %v1800
  %1875 = vst.msk [vmem:[%s7 + $0xd0] sm:$0xff] %vm1848, %v1802
  %1876 = vst.msk [vmem:[%s7 + $0xd8] sm:$0xff] %vm1848, %v1804
  %1877 = vst.msk [vmem:[%s7 + $0xe0] sm:$0xff] %vm1848, %v1806
  %1878 = vst.msk [vmem:[%s7 + $0xe8] sm:$0xff] %vm1848, %v1808
  %1879 = vst.msk [vmem:[%s7 + $0xf0] sm:$0xff] %vm1848, %v1810
  %1880 = vst.msk [vmem:[%s7 + $0xf8] sm:$0xff] %vm1848, %v1812
  %1881 = vst.msk [vmem:[%s7 + $0x100] sm:$0xff] %vm1848, %v1814
  // Predicated region
  $region30: #{tpu_custom_call.1} parent=0 // pred_check
    _
  $region31: #{tpu_custom_call.1} parent=0 // pred_check_branch
    %1883 = sbr.rel (0) target = $region33
  $region32: #{tpu_custom_call.1} parent=0 // pred_region
    _
  $region33: #{tpu_custom_call.1} parent=0 // pred_fallthru
    _
  // Predicated region
  $region34: #{tpu_custom_call.1} parent=0 // pred_check
    _
  $region35: #{tpu_custom_call.1} parent=0 // pred_check_branch
    %1885 = sbr.rel (0) target = $region37
  $region36: #{tpu_custom_call.1} parent=0 // pred_region
    _
  $region37: #{tpu_custom_call.1} parent=0 // pred_fallthru
    _

</llo_original>
